<compile_context>
chip_gen: v7x
topology: tpu7x:2x2x1
jax: 0.10.0
libtpu: 0.0.40
codegen_flags: <defaults>
</compile_context>

<pallas_src>
import math
import functools

import numpy as np
import jax
import jax.numpy as jnp
from jax.experimental import pallas as pl
from jax.experimental.pallas import tpu as pltpu


def _round_up(x, m):
    return ((x + m - 1) // m) * m


def _decoder_kernel(z_ref, s_ref, t_ref, b_ref, o_ref, *, slope):
    # z_ref: (bb, L+1)   f32  latent block with appended constant-1 column
    # s_ref: (L+1, M)    bf16 folded conv1 (latent rows + coord/bias row)
    # t_ref: (M, Np)     bf16 Toeplitz of final 5x5 conv, lane-padded to Np
    # b_ref: (1, Np)     f32  final-conv bias per (co, y, x), lane-padded
    # o_ref: (bb, Np)    f32  NCHW-flat output block
    z = z_ref[...].astype(jnp.bfloat16)
    a = jnp.dot(z, s_ref[...], preferred_element_type=jnp.float32)   # conv1
    a = jnp.maximum(a, slope * a)                                     # LeakyReLU
    y = jnp.dot(a.astype(jnp.bfloat16), t_ref[...],
                preferred_element_type=jnp.float32)                   # final conv
    o_ref[...] = (y + b_ref[...]).astype(o_ref.dtype)


class BroadcastDecoderPallas:
    """Pallas port of models/baseline_vae/model.py::BroadcastDecoder."""

    def __init__(self, latent_size, width, height, broadcast_size=8,
                 channel_size_per_layer=(32, 32, 32, 32),
                 input_channels=3, *, key):
        downsample = math.ceil(math.log2(width / broadcast_size))
        self.h_broadcast = height // 2 ** downsample
        self.w_broadcast = width // 2 ** downsample
        H, W = self.h_broadcast, self.w_broadcast

        ys = jnp.linspace(-1.0, 1.0, H)
        xs = jnp.linspace(-1.0, 1.0, W)
        yy, xx = jnp.meshgrid(ys, xs, indexing="ij")
        coord = jnp.stack((yy, xx))                       # (2, H, W)
        self.coord_map = coord[None]                      # (1, 2, H, W) for reference

        L = latent_size
        self.latent_size = L
        cin1 = L + 2
        c0 = channel_size_per_layer[0]
        cl = channel_size_per_layer[-1]
        Cout = input_channels
        self.input_channels = Cout

        # TODO(synk): build_residual_stack(...) is not defined in the reference
        # snippet, so the residual/upsampling stack between the first and final
        # conv is omitted; channel_size_per_layer is chosen with first == last
        # so the remaining layers chain correctly.
        assert c0 == cl, "residual stack omitted: need first == last channels"

        k1, k2, k3 = jax.random.split(key, 3)
        bound1 = 1.0 / math.sqrt(cin1 * 25)
        self.w1 = jax.random.uniform(k1, (5, 5, cin1, c0), jnp.float32,
                                     minval=-bound1, maxval=bound1)
        self.b1 = jax.random.uniform(k2, (c0,), jnp.float32,
                                     minval=-bound1, maxval=bound1)
        self.wf = 0.01 * jax.random.truncated_normal(
            k3, -2.0, 2.0, (5, 5, cl, Cout), jnp.float32)
        self.bf = jnp.zeros((Cout,), jnp.float32)

        # ---------- one-time weight folding (float64 on host for exactness) ----------
        w1_np = np.asarray(self.w1, dtype=np.float64)
        b1_np = np.asarray(self.b1, dtype=np.float64)
        wf_np = np.asarray(self.wf, dtype=np.float64)
        bf_np = np.asarray(self.bf, dtype=np.float64)
        coord_np = np.asarray(coord, dtype=np.float64)    # (2, H, W)

        # conv1, latent channels: S[l, y, x, co] = sum over in-bounds taps of w1.
        oy = np.arange(H)[:, None]
        ox = np.arange(W)[:, None]
        dd = np.arange(5)[None, :]
        my = ((oy + dd - 2 >= 0) & (oy + dd - 2 < H)).astype(np.float64)   # (H, 5)
        mx = ((ox + dd - 2 >= 0) & (ox + dd - 2 < W)).astype(np.float64)   # (W, 5)
        S6 = np.einsum('yi,xj,ijlc->lyxc', my, mx, w1_np[:, :, :L, :])     # (L,H,W,c0)

        # conv1, coord channels + bias (batch-independent constant map).
        coord_pad = np.pad(coord_np, ((0, 0), (2, 2), (2, 2)))             # (2,H+4,W+4)
        windows = np.zeros((5, 5, 2, H, W), np.float64)
        for i in range(5):
            for j in range(5):
                windows[i, j] = coord_pad[:, i:i + H, j:j + W]
        const = np.einsum('ijcyx,ijcf->yxf', windows, w1_np[:, :, L:, :]) + b1_np

        # Final 5x5 "SAME" conv as a Toeplitz matrix:
        #   T[(y', x', ci), (co, y, x)] = wf[y'-y+2, x'-x+2, ci, co]  (if in range).
        T6 = np.zeros((H, W, cl, Cout, H, W), np.float64)
        for dy in range(5):
            for dx in range(5):
                ys_ = np.arange(max(0, 2 - dy), min(H, H + 2 - dy))
                xs_ = np.arange(max(0, 2 - dx), min(W, W + 2 - dx))
                if ys_.size == 0 or xs_.size == 0:
                    continue
                T6[(ys_ + dy - 2)[:, None], (xs_ + dx - 2)[None, :], :, :,
                   ys_[:, None], xs_[None, :]] = wf_np[dy, dx][None, None]

        n_mid = H * W * c0
        n_out = Cout * H * W
        n_out_pad = _round_up(n_out, 128)          # lane-dense output (multiple of 128)
        self.n_mid, self.n_out, self.n_out_pad = n_mid, n_out, n_out_pad

        # Fold the constant map into the first matmul: extra "ones" row.
        S_aug = np.concatenate(
            [S6.reshape(L, n_mid), const.reshape(1, n_mid)], axis=0)       # (L+1, n_mid)

        T_pad = np.zeros((n_mid, n_out_pad), np.float64)
        T_pad[:, :n_out] = T6.reshape(n_mid, n_out)
        b_pad = np.zeros((1, n_out_pad), np.float64)
        b_pad[0, :n_out] = np.repeat(bf_np, H * W)

        # bf16 weights (full-rate MXU on v6e/v7x, half the DMA/VMEM); accumulation
        # in the kernel stays f32 via preferred_element_type.
        self.S = jnp.asarray(S_aug, dtype=jnp.float32).astype(jnp.bfloat16)
        self.T = jnp.asarray(T_pad, dtype=jnp.float32).astype(jnp.bfloat16)
        self.b2p = jnp.asarray(b_pad, dtype=jnp.float32)

        # The folded Toeplitz scales ~ (H*W*C)*(Cout*H*W): guard VMEM residency.
        weight_bytes = self.S.size * 2 + self.T.size * 2 + self.b2p.size * 4
        assert weight_bytes < 8 * 1024 * 1024, (
            "folded weights too large to keep VMEM-resident "
            f"({weight_bytes} bytes); reduce broadcast_size / channels")

    def __call__(self, z, *, batch_block=256):
        # z: (B, latent_size) -> (B, input_channels, H, W)
        B, L = z.shape
        assert L == self.latent_size
        assert batch_block % 8 == 0
        H, W = self.h_broadcast, self.w_broadcast
        Lp = L + 1

        # Append the constant-1 column (folds conv1's coord/bias constant into
        # the first matmul; the MXU K dim is padded to 128 anyway, so it's free).
        z_aug = jnp.concatenate(
            [z.astype(jnp.float32), jnp.ones((B, 1), jnp.float32)], axis=1)

        # Batch tiling: bb rows per grid step (multiple of 8, capped so the
        # (bb, n_mid) f32 intermediate stays small); pad batch so every block
        # is full -- VMEM refs have no runtime bounds check.
        bb = min(_round_up(B, 8), batch_block)
        Bp = _round_up(B, bb)
        if Bp != B:
            z_aug = jnp.pad(z_aug, ((0, Bp - B), (0, 0)))
        n_blocks = Bp // bb

        out = pl.pallas_call(
            functools.partial(_decoder_kernel, slope=0.01),
            out_shape=jax.ShapeDtypeStruct((Bp, self.n_out_pad), jnp.float32),
            grid=(n_blocks,),
            in_specs=[
                pl.BlockSpec((bb, Lp), lambda i: (i, 0)),
                # Weight blocks: constant index_map -> DMA'd once, stay resident.
                pl.BlockSpec(self.S.shape, lambda i: (0, 0)),
                pl.BlockSpec(self.T.shape, lambda i: (0, 0)),
                pl.BlockSpec(self.b2p.shape, lambda i: (0, 0)),
            ],
            out_specs=pl.BlockSpec((bb, self.n_out_pad), lambda i: (i, 0)),
            compiler_params=pltpu.CompilerParams(
                dimension_semantics=("parallel",)),
        )(z_aug, self.S, self.T, self.b2p)

        # Drop batch/lane padding; kernel already emitted NCHW-flat (co, y, x).
        out = out[:B, :self.n_out]
        return out.reshape(B, self.input_channels, H, W)


# ------------------------- pure-JAX reference (unfolded, f32) -------------------------
def _ref_conv5x5(x_nhwc, w_hwio, b, leaky_slope=None):
    y = jax.lax.conv_general_dilated(
        x_nhwc, w_hwio, window_strides=(1, 1), padding="SAME",
        dimension_numbers=("NHWC", "HWIO", "NHWC"))
    y = y + b
    if leaky_slope is not None:
        y = jnp.where(y >= 0, y, leaky_slope * y)
    return y


def _ref_forward(dec, z):
    B, L = z.shape
    h, w = dec.h_broadcast, dec.w_broadcast
    x = jnp.broadcast_to(z[:, :, None, None], (B, L, h, w))
    coord = jnp.broadcast_to(dec.coord_map, (B, 2, h, w))
    x = jnp.concatenate([x, coord], axis=1)
    x = jnp.transpose(x, (0, 2, 3, 1))
    x = _ref_conv5x5(x, dec.w1, dec.b1, leaky_slope=0.01)
    x = _ref_conv5x5(x, dec.wf, dec.bf, leaky_slope=None)
    return jnp.transpose(x, (0, 3, 1, 2))


if __name__ == "__main__":
    key = jax.random.PRNGKey(0)
    kparam, kz = jax.random.split(key)

    latent_size = 8
    width = height = 8          # broadcast_size=8 -> downsample=0 -> 8x8 grid
    batch = 2

    dec = BroadcastDecoderPallas(latent_size=latent_size, width=width,
                                 height=height, broadcast_size=8,
                                 channel_size_per_layer=(32, 32, 32, 32),
                                 input_channels=3, key=kparam)

    z = jax.random.normal(kz, (batch, latent_size), dtype=jnp.float32)

    out = jax.block_until_ready(dec(z))
    assert out.shape == (batch, 3, height, width), out.shape

    ref = jax.block_until_ready(_ref_forward(dec, z))
    max_err = float(jnp.max(jnp.abs(out - ref)))
    # bf16 folded weights / bf16 dot inputs with f32 accumulation: expected
    # abs error ~1e-3 vs the f32 reference; tolerance set accordingly.
    assert jnp.allclose(out, ref, atol=2e-2, rtol=2e-2), max_err

    # Second check: batch not a multiple of the tile and a multi-step grid
    # (batch_block=8 -> 3 grid steps over a padded batch of 24).
    z2 = jax.random.normal(jax.random.split(kz)[0], (20, latent_size), jnp.float32)
    out2 = jax.block_until_ready(dec(z2, batch_block=8))
    ref2 = jax.block_until_ready(_ref_forward(dec, z2))
    assert out2.shape == (20, 3, height, width), out2.shape
    max_err2 = float(jnp.max(jnp.abs(out2 - ref2)))
    assert jnp.allclose(out2, ref2, atol=2e-2, rtol=2e-2), max_err2

    print("KERNEL_OK")
</pallas_src>

<mosaic_0001>
module attributes {stable_mosaic.version = 11 : i64} {
  func.func @_decoder_kernel(%arg0: i32, %arg1: memref<8x9xf32, #tpu.memory_space<vmem>>, %arg2: memref<9x2048xbf16, #tpu.memory_space<vmem>>, %arg3: memref<2048x256xbf16, #tpu.memory_space<vmem>>, %arg4: memref<1x256xf32, #tpu.memory_space<vmem>>, %arg5: memref<8x256xf32, #tpu.memory_space<vmem>>) attributes {dimension_semantics = [#tpu.dimension_semantics<parallel>], iteration_bounds = array<i64: 1>, scalar_prefetch = 0 : i64, scratch_operands = 0 : i64, tpu.core_type = #tpu.core_type<tc>, window_params = [{transform_indices = @transform_0, window_bounds = array<i64: 8, 9>}, {pipeline_mode = #tpu.pipeline_mode<synchronous>, transform_indices = @transform_1, window_bounds = array<i64: 9, 2048>}, {pipeline_mode = #tpu.pipeline_mode<synchronous>, transform_indices = @transform_2, window_bounds = array<i64: 2048, 256>}, {pipeline_mode = #tpu.pipeline_mode<synchronous>, transform_indices = @transform_3, window_bounds = array<i64: 1, 256>}, {transform_indices = @transform_4, window_bounds = array<i64: 8, 256>}]} {
    %c0 = arith.constant 0 : index
    %c0_0 = arith.constant 0 : index
    %0 = vector.load %arg1[%c0, %c0_0] : memref<8x9xf32, #tpu.memory_space<vmem>>, vector<8x9xf32>
    %1 = arith.truncf %0 : vector<8x9xf32> to vector<8x9xbf16>
    %c0_1 = arith.constant 0 : index
    %c0_2 = arith.constant 0 : index
    %2 = vector.load %arg2[%c0_1, %c0_2] : memref<9x2048xbf16, #tpu.memory_space<vmem>>, vector<9x2048xbf16>
    %cst = arith.constant dense<0.000000e+00> : vector<8x2048xf32>
    %3 = tpu.matmul %1, %2, %cst {dimension_numbers = #tpu.dot_dimension_numbers<[1], [0], [0], [1], [0, 0, 1, 1], [], []>} : vector<8x9xbf16>, vector<9x2048xbf16>, vector<8x2048xf32> -> vector<8x2048xf32>
    %cst_3 = arith.constant 0.00999999977 : f32
    %4 = vector.broadcast %cst_3 : f32 to vector<8x2048xf32>
    %5 = arith.mulf %4, %3 : vector<8x2048xf32>
    %6 = arith.maximumf %3, %5 : vector<8x2048xf32>
    %7 = arith.truncf %6 : vector<8x2048xf32> to vector<8x2048xbf16>
    %c0_4 = arith.constant 0 : index
    %c0_5 = arith.constant 0 : index
    %8 = vector.load %arg3[%c0_4, %c0_5] : memref<2048x256xbf16, #tpu.memory_space<vmem>>, vector<2048x256xbf16>
    %cst_6 = arith.constant dense<0.000000e+00> : vector<8x256xf32>
    %9 = tpu.matmul %7, %8, %cst_6 {dimension_numbers = #tpu.dot_dimension_numbers<[1], [0], [0], [1], [0, 0, 1, 1], [], []>} : vector<8x2048xbf16>, vector<2048x256xbf16>, vector<8x256xf32> -> vector<8x256xf32>
    %c0_7 = arith.constant 0 : index
    %c0_8 = arith.constant 0 : index
    %10 = vector.load %arg4[%c0_7, %c0_8] : memref<1x256xf32, #tpu.memory_space<vmem>>, vector<1x256xf32>
    %11 = vector.broadcast %10 : vector<1x256xf32> to vector<8x256xf32>
    %12 = arith.addf %9, %11 : vector<8x256xf32>
    %c0_9 = arith.constant 0 : index
    %c0_10 = arith.constant 0 : index
    %13 = vector.load %arg5[%c0_9, %c0_10] : memref<8x256xf32, #tpu.memory_space<vmem>>, vector<8x256xf32>
    tpu.vector_store %arg5[%c0_9, %c0_10], %12 {strides = array<i32>} : memref<8x256xf32, #tpu.memory_space<vmem>>, vector<8x256xf32>,
    return
  }
  func.func @transform_0(%arg0: i32) -> (i32, i32) {
    %c0_i32 = arith.constant 0 : i32
    %c0_i32_0 = arith.constant 0 : i32
    return %arg0, %c0_i32 : i32, i32
  }
  func.func @transform_1(%arg0: i32) -> (i32, i32) {
    %c0_i32 = arith.constant 0 : i32
    %c0_i32_0 = arith.constant 0 : i32
    %c0_i32_1 = arith.constant 0 : i32
    return %c0_i32, %c0_i32_0 : i32, i32
  }
  func.func @transform_2(%arg0: i32) -> (i32, i32) {
    %c0_i32 = arith.constant 0 : i32
    %c0_i32_0 = arith.constant 0 : i32
    %c0_i32_1 = arith.constant 0 : i32
    return %c0_i32, %c0_i32_0 : i32, i32
  }
  func.func @transform_3(%arg0: i32) -> (i32, i32) {
    %c0_i32 = arith.constant 0 : i32
    %c0_i32_0 = arith.constant 0 : i32
    %c0_i32_1 = arith.constant 0 : i32
    return %c0_i32, %c0_i32_0 : i32, i32
  }
  func.func @transform_4(%arg0: i32) -> (i32, i32) {
    %c0_i32 = arith.constant 0 : i32
    %c0_i32_0 = arith.constant 0 : i32
    return %arg0, %c0_i32 : i32, i32
  }
}

</mosaic_0001>

<llo_original>
// kernel: tpu_custom_call.1
$region0: #{tpu_custom_call.1}
  #allocation0 [shape = 'u32[]', space=smem, size = 0x4, offset = 0x4, fixed_abs, tag = 'smem constant byte address 0x4 - core index']
  #allocation1 [shape = 'u32[144,128]{1,0:T(1,128)}', space=vmem, size = 0x12000, scoped, tag = 'internal scratch']
  %s0 = inlined_call_operand.hbm [shape: f32[8,9], index: 0, kind: input, shape index: {}]
  %s1 = inlined_call_operand.hbm [shape: bf16[9,2048], index: 1, kind: input, shape index: {}]
  %s2 = inlined_call_operand.hbm [shape: bf16[2048,256], index: 2, kind: input, shape index: {}]
  %s3 = inlined_call_operand.vmem [shape: f32[1,256], index: 3, kind: input, shape index: {}]
  %s4 = inlined_call_operand.hbm [shape: f32[8,256], index: 4, kind: output, shape index: {}]
  %s5 = sld [smem:[#allocation0]]
  $region38: #{tpu_custom_call.1} parent=0
    _
  %s7 = ssub.s32 1, %s5
  %s8 = scalar_select 0, %s7, %s5
  $region1: #{tpu_custom_call.1} parent=0
    #allocation2 [shape = 'u8[4096]{0}', space=vmem, size = 0x1000, scoped, tag = 'input window, operand 0, single buffered']
    #allocation3 [shape = 's32[1]{0}', space=sflag, size = 0x4, scoped, tag = 'scoped memory for tpu_custom_call.1']
    #allocation4 [shape = 's32[1]{0}', space=sflag, size = 0x4, scoped, tag = 'scoped memory for tpu_custom_call.1']
    #allocation5 [shape = 'u8[65536]{0}', space=vmem, size = 0x10000, scoped, tag = 'input window, operand 1, single buffered']
    #allocation6 [shape = 's32[1]{0}', space=sflag, size = 0x4, scoped, tag = 'scoped memory for tpu_custom_call.1']
    #allocation7 [shape = 'u8[1048576]{0}', space=vmem, size = 0x100000, scoped, tag = 'input window, operand 2, single buffered']
    #allocation8 [shape = 'u8[8192]{0}', space=vmem, size = 0x2000, scoped, tag = 'output window, operand 0, single buffered']
    %9 = vsyncpa [#allocation3], 0
    %10 = vsyncpa [#allocation6], 0
    %11 = vsyncpa [#allocation4], 0
    // Predicated region
    $region2: #{tpu_custom_call.1} parent=1 // pred_check
      _
    $region3: #{tpu_custom_call.1} parent=1 // pred_check_branch
      %13 = sbr.rel (0) target = $region5
    $region4: #{tpu_custom_call.1} parent=1 // pred_region
      %s15 = ssub.s32 128, 128
      %16 = vsyncadd [#allocation3], %s15
      %s18 = sshll.u32 [#allocation2], 4
      %s19 = int_to_ptr.vmem [resolvable:$true] %s18
      %21 = dma.hbm_to_vmem [thread:$0]  %s0, 128, %s19, [#allocation3]
    $region5: #{tpu_custom_call.1} parent=1 // pred_fallthru
      _
    // Predicated region
    $region6: #{tpu_custom_call.1} parent=1 // pred_check
      _
    $region7: #{tpu_custom_call.1} parent=1 // pred_check_branch
      %23 = sbr.rel (0) target = $region9
    $region8: #{tpu_custom_call.1} parent=1 // pred_region
      %s25 = ssub.s32 2048, 2048
      %26 = vsyncadd [#allocation6], %s25
      %s27 = sshll.u32 [#allocation5], 4
      %s28 = int_to_ptr.vmem [resolvable:$true] %s27
      %33 = dma.hbm_to_vmem [thread:$0]  %s1, 2048, %s28, [#allocation6], 1024, 1024, 64
    $region9: #{tpu_custom_call.1} parent=1 // pred_fallthru
      _
    // Predicated region
    $region10: #{tpu_custom_call.1} parent=1 // pred_check
      _
    $region11: #{tpu_custom_call.1} parent=1 // pred_check_branch
      %35 = sbr.rel (0) target = $region13
    $region12: #{tpu_custom_call.1} parent=1 // pred_region
      %s37 = ssub.s32 32768, 32768
      %38 = vsyncadd [#allocation6], %s37
      %s39 = sshll.u32 [#allocation7], 4
      %s40 = int_to_ptr.vmem [resolvable:$true] %s39
      %45 = dma.hbm_to_vmem [thread:$0]  %s2, 32768, %s40, [#allocation6], 128, 128, 8
    $region13: #{tpu_custom_call.1} parent=1 // pred_fallthru
      _
    // Predicated region
    $region14: #{tpu_custom_call.1} parent=1 // pred_check
      _
    $region15: #{tpu_custom_call.1} parent=1 // pred_check_branch
      %47 = sbr.rel (0) target = $region17
    $region16: #{tpu_custom_call.1} parent=1 // pred_region
      _
    $region17: #{tpu_custom_call.1} parent=1 // pred_fallthru
      _
    // Predicated region
    $region18: #{tpu_custom_call.1} parent=1 // pred_check
      _
    $region19: #{tpu_custom_call.1} parent=1 // pred_check_branch
      %49 = sbr.rel (0) target = $region21
    $region20: #{tpu_custom_call.1} parent=1 // pred_region
      %50 = dma.done [#allocation3], 128
    $region21: #{tpu_custom_call.1} parent=1 // pred_fallthru
      _
    // Predicated region
    $region22: #{tpu_custom_call.1} parent=1 // pred_check
      _
    $region23: #{tpu_custom_call.1} parent=1 // pred_check_branch
      %52 = sbr.rel (0) target = $region25
    $region24: #{tpu_custom_call.1} parent=1 // pred_region
      %53 = dma.done [#allocation6], 2048
    $region25: #{tpu_custom_call.1} parent=1 // pred_fallthru
      _
    // Predicated region
    $region26: #{tpu_custom_call.1} parent=1 // pred_check
      _
    $region27: #{tpu_custom_call.1} parent=1 // pred_check_branch
      %55 = sbr.rel (0) target = $region29
    $region28: #{tpu_custom_call.1} parent=1 // pred_region
      %56 = dma.done [#allocation6], 32768
    $region29: #{tpu_custom_call.1} parent=1 // pred_fallthru
      _
    %v58 = vld [vmem:[#allocation2] sm:$0xff]
    %v59 = vpack.c.bf16 %v58, %v58
    %v60 = vld [vmem:[#allocation5] sm:$0xff]
    %v61 = vld [vmem:[#allocation5 + $0x8] sm:$0xff]
    %v62 = vld [vmem:[#allocation5 + $0x10] sm:$0xff]
    %v63 = vld [vmem:[#allocation5 + $0x18] sm:$0xff]
    %v64 = vld [vmem:[#allocation5 + $0x20] sm:$0xff]
    %v65 = vld [vmem:[#allocation5 + $0x28] sm:$0xff]
    %v66 = vld [vmem:[#allocation5 + $0x30] sm:$0xff]
    %v67 = vld [vmem:[#allocation5 + $0x38] sm:$0xff]
    %v68 = vld [vmem:[#allocation5 + $0x40] sm:$0x11]
    %v69 = vld [vmem:[#allocation5 + $0x48] sm:$0x11]
    %v70 = vld [vmem:[#allocation5 + $0x50] sm:$0x11]
    %v71 = vld [vmem:[#allocation5 + $0x58] sm:$0x11]
    %v72 = vld [vmem:[#allocation5 + $0x60] sm:$0x11]
    %v73 = vld [vmem:[#allocation5 + $0x68] sm:$0x11]
    %v74 = vld [vmem:[#allocation5 + $0x70] sm:$0x11]
    %v75 = vld [vmem:[#allocation5 + $0x78] sm:$0x11]
    %v92 = vunpack.c.l.b16 %v60
    %v93 = vunpack.c.h.b16 %v60
    %v94 = vunpack.c.l.b16 %v61
    %v95 = vunpack.c.h.b16 %v61
    %v96 = vunpack.c.l.b16 %v62
    %v97 = vunpack.c.h.b16 %v62
    %v98 = vunpack.c.l.b16 %v63
    %v99 = vunpack.c.h.b16 %v63
    %v100 = vunpack.c.l.b16 %v64
    %v101 = vunpack.c.h.b16 %v64
    %v102 = vunpack.c.l.b16 %v65
    %v103 = vunpack.c.h.b16 %v65
    %v104 = vunpack.c.l.b16 %v66
    %v105 = vunpack.c.h.b16 %v66
    %v106 = vunpack.c.l.b16 %v67
    %v107 = vunpack.c.h.b16 %v67
    %v108 = vunpack.c.l.b16 %v68
    %v109 = vunpack.c.h.b16 %v68
    %v110 = vunpack.c.l.b16 %v69
    %v111 = vunpack.c.h.b16 %v69
    %v112 = vunpack.c.l.b16 %v70
    %v113 = vunpack.c.h.b16 %v70
    %v114 = vunpack.c.l.b16 %v71
    %v115 = vunpack.c.h.b16 %v71
    %v116 = vunpack.c.l.b16 %v72
    %v117 = vunpack.c.h.b16 %v72
    %v118 = vunpack.c.l.b16 %v73
    %v119 = vunpack.c.h.b16 %v73
    %v120 = vunpack.c.l.b16 %v74
    %v121 = vunpack.c.h.b16 %v74
    %v122 = vunpack.c.l.b16 %v75
    %v123 = vunpack.c.h.b16 %v75
    %v124 = vpack.c.b16 %v108, %v92
    %v125 = vpack.c.b16 %v109, %v93
    %v126 = vpack.c.b16 %v110, %v94
    %v127 = vpack.c.b16 %v111, %v95
    %v128 = vpack.c.b16 %v112, %v96
    %v129 = vpack.c.b16 %v113, %v97
    %v130 = vpack.c.b16 %v114, %v98
    %v131 = vpack.c.b16 %v115, %v99
    %v132 = vpack.c.b16 %v116, %v100
    %v133 = vpack.c.b16 %v117, %v101
    %v134 = vpack.c.b16 %v118, %v102
    %v135 = vpack.c.b16 %v119, %v103
    %v136 = vpack.c.b16 %v120, %v104
    %v137 = vpack.c.b16 %v121, %v105
    %v138 = vpack.c.b16 %v122, %v106
    %v139 = vpack.c.b16 %v123, %v107
    %vm140 = vcmask 72704
    %v142 = vsel %vm140, %v59, 0
    %vm144 = vcmask 1043456
    %vm145 = vcmask 1044480
    %v146 = vsel %vm144, 4294967295, 65535
    %v147 = vsel %vm145, %v146, 0
    %v149 = vand.u32 %v124, %v147
    %v152 = vand.u32 %v125, %v147
    %v155 = vand.u32 %v126, %v147
    %v158 = vand.u32 %v127, %v147
    %v161 = vand.u32 %v128, %v147
    %v164 = vand.u32 %v129, %v147
    %v167 = vand.u32 %v130, %v147
    %v170 = vand.u32 %v131, %v147
    %v173 = vand.u32 %v132, %v147
    %v176 = vand.u32 %v133, %v147
    %v179 = vand.u32 %v134, %v147
    %v182 = vand.u32 %v135, %v147
    %v185 = vand.u32 %v136, %v147
    %v188 = vand.u32 %v137, %v147
    %v191 = vand.u32 %v138, %v147
    %v194 = vand.u32 %v139, %v147
    %196 = vmatprep.subr.bf16.mxu0 %v152
    %197 = vmatpush1.bf16.msra.mxu0 %v149
    %198 = vmatprep.subr.bf16.mxu0 0
    %199 = vmatpush1.bf16.msra.mxu0 0
    %200 = vmatprep.subr.bf16.mxu0 0
    %201 = vmatpush1.bf16.msra.mxu0 0
    %202 = vmatprep.subr.bf16.mxu0 0
    %203 = vmatpush1.bf16.msra.mxu0 0
    %204 = vmatprep.subr.bf16.mxu0 0
    %205 = vmatpush1.bf16.msra.mxu0 0
    %206 = vmatprep.subr.bf16.mxu0 0
    %207 = vmatpush1.bf16.msra.mxu0 0
    %208 = vmatprep.subr.bf16.mxu0 0
    %209 = vmatpush1.bf16.msra.mxu0 0
    %210 = vmatprep.subr.bf16.mxu0 0
    %211 = vmatpush1.bf16.msra.mxu0 0
    %212 = vmatprep.subr.bf16.mxu0 0
    %213 = vmatpush1.bf16.msra.mxu0 0
    %214 = vmatprep.subr.bf16.mxu0 0
    %215 = vmatpush1.bf16.msra.mxu0 0
    %216 = vmatprep.subr.bf16.mxu0 0
    %217 = vmatpush1.bf16.msra.mxu0 0
    %218 = vmatprep.subr.bf16.mxu0 0
    %219 = vmatpush1.bf16.msra.mxu0 0
    %220 = vmatprep.subr.bf16.mxu0 0
    %221 = vmatpush1.bf16.msra.mxu0 0
    %222 = vmatprep.subr.bf16.mxu0 0
    %223 = vmatpush1.bf16.msra.mxu0 0
    %224 = vmatprep.subr.bf16.mxu0 0
    %225 = vmatpush1.bf16.msra.mxu0 0
    %226 = vmatprep.subr.bf16.mxu0 0
    %227 = vmatpush1.bf16.msra.mxu0 0
    %228 = vmatprep.mubr.bf16.mxu0 0
    %229 = vmatmul.mubr.bf16.gmra.mrb[0].mxu0 %v142
    %v230 = vpop.f32.mrb[0].mxu0
    %v231 = vadd.f32 0.0, %v230
    %v232 = vpop.f32.mrb[0].mxu0
    %v233 = vadd.f32 0.0, %v232
    %v234 = vpop.f32.mrb[0].mxu0
    %v235 = vpop.f32.mrb[0].mxu0
    %236 = vdwg.mxu0
    %237 = vmatprep.subr.bf16.mxu0 %v158
    %238 = vmatpush1.bf16.msra.mxu0 %v155
    %239 = vmatprep.subr.bf16.mxu0 0
    %240 = vmatpush1.bf16.msra.mxu0 0
    %241 = vmatprep.subr.bf16.mxu0 0
    %242 = vmatpush1.bf16.msra.mxu0 0
    %243 = vmatprep.subr.bf16.mxu0 0
    %244 = vmatpush1.bf16.msra.mxu0 0
    %245 = vmatprep.subr.bf16.mxu0 0
    %246 = vmatpush1.bf16.msra.mxu0 0
    %247 = vmatprep.subr.bf16.mxu0 0
    %248 = vmatpush1.bf16.msra.mxu0 0
    %249 = vmatprep.subr.bf16.mxu0 0
    %250 = vmatpush1.bf16.msra.mxu0 0
    %251 = vmatprep.subr.bf16.mxu0 0
    %252 = vmatpush1.bf16.msra.mxu0 0
    %253 = vmatprep.subr.bf16.mxu0 0
    %254 = vmatpush1.bf16.msra.mxu0 0
    %255 = vmatprep.subr.bf16.mxu0 0
    %256 = vmatpush1.bf16.msra.mxu0 0
    %257 = vmatprep.subr.bf16.mxu0 0
    %258 = vmatpush1.bf16.msra.mxu0 0
    %259 = vmatprep.subr.bf16.mxu0 0
    %260 = vmatpush1.bf16.msra.mxu0 0
    %261 = vmatprep.subr.bf16.mxu0 0
    %262 = vmatpush1.bf16.msra.mxu0 0
    %263 = vmatprep.subr.bf16.mxu0 0
    %264 = vmatpush1.bf16.msra.mxu0 0
    %265 = vmatprep.subr.bf16.mxu0 0
    %266 = vmatpush1.bf16.msra.mxu0 0
    %267 = vmatprep.subr.bf16.mxu0 0
    %268 = vmatpush1.bf16.msra.mxu0 0
    %269 = vmatprep.mubr.bf16.mxu0 0
    %270 = vmatmul.mubr.bf16.gmra.mrb[0].mxu0 %v142
    %v271 = vpop.f32.mrb[0].mxu0
    %v272 = vadd.f32 0.0, %v271
    %v273 = vpop.f32.mrb[0].mxu0
    %v274 = vadd.f32 0.0, %v273
    %v275 = vpop.f32.mrb[0].mxu0
    %v276 = vpop.f32.mrb[0].mxu0
    %277 = vdwg.mxu0
    %278 = vmatprep.subr.bf16.mxu0 %v164
    %279 = vmatpush1.bf16.msra.mxu0 %v161
    %280 = vmatprep.subr.bf16.mxu0 0
    %281 = vmatpush1.bf16.msra.mxu0 0
    %282 = vmatprep.subr.bf16.mxu0 0
    %283 = vmatpush1.bf16.msra.mxu0 0
    %284 = vmatprep.subr.bf16.mxu0 0
    %285 = vmatpush1.bf16.msra.mxu0 0
    %286 = vmatprep.subr.bf16.mxu0 0
    %287 = vmatpush1.bf16.msra.mxu0 0
    %288 = vmatprep.subr.bf16.mxu0 0
    %289 = vmatpush1.bf16.msra.mxu0 0
    %290 = vmatprep.subr.bf16.mxu0 0
    %291 = vmatpush1.bf16.msra.mxu0 0
    %292 = vmatprep.subr.bf16.mxu0 0
    %293 = vmatpush1.bf16.msra.mxu0 0
    %294 = vmatprep.subr.bf16.mxu0 0
    %295 = vmatpush1.bf16.msra.mxu0 0
    %296 = vmatprep.subr.bf16.mxu0 0
    %297 = vmatpush1.bf16.msra.mxu0 0
    %298 = vmatprep.subr.bf16.mxu0 0
    %299 = vmatpush1.bf16.msra.mxu0 0
    %300 = vmatprep.subr.bf16.mxu0 0
    %301 = vmatpush1.bf16.msra.mxu0 0
    %302 = vmatprep.subr.bf16.mxu0 0
    %303 = vmatpush1.bf16.msra.mxu0 0
    %304 = vmatprep.subr.bf16.mxu0 0
    %305 = vmatpush1.bf16.msra.mxu0 0
    %306 = vmatprep.subr.bf16.mxu0 0
    %307 = vmatpush1.bf16.msra.mxu0 0
    %308 = vmatprep.subr.bf16.mxu0 0
    %309 = vmatpush1.bf16.msra.mxu0 0
    %310 = vmatprep.mubr.bf16.mxu0 0
    %311 = vmatmul.mubr.bf16.gmra.mrb[0].mxu0 %v142
    %v312 = vpop.f32.mrb[0].mxu0
    %v313 = vadd.f32 0.0, %v312
    %v314 = vpop.f32.mrb[0].mxu0
    %v315 = vadd.f32 0.0, %v314
    %v316 = vpop.f32.mrb[0].mxu0
    %v317 = vpop.f32.mrb[0].mxu0
    %318 = vdwg.mxu0
    %319 = vmatprep.subr.bf16.mxu0 %v170
    %320 = vmatpush1.bf16.msra.mxu0 %v167
    %321 = vmatprep.subr.bf16.mxu0 0
    %322 = vmatpush1.bf16.msra.mxu0 0
    %323 = vmatprep.subr.bf16.mxu0 0
    %324 = vmatpush1.bf16.msra.mxu0 0
    %325 = vmatprep.subr.bf16.mxu0 0
    %326 = vmatpush1.bf16.msra.mxu0 0
    %327 = vmatprep.subr.bf16.mxu0 0
    %328 = vmatpush1.bf16.msra.mxu0 0
    %329 = vmatprep.subr.bf16.mxu0 0
    %330 = vmatpush1.bf16.msra.mxu0 0
    %331 = vmatprep.subr.bf16.mxu0 0
    %332 = vmatpush1.bf16.msra.mxu0 0
    %333 = vmatprep.subr.bf16.mxu0 0
    %334 = vmatpush1.bf16.msra.mxu0 0
    %335 = vmatprep.subr.bf16.mxu0 0
    %336 = vmatpush1.bf16.msra.mxu0 0
    %337 = vmatprep.subr.bf16.mxu0 0
    %338 = vmatpush1.bf16.msra.mxu0 0
    %339 = vmatprep.subr.bf16.mxu0 0
    %340 = vmatpush1.bf16.msra.mxu0 0
    %341 = vmatprep.subr.bf16.mxu0 0
    %342 = vmatpush1.bf16.msra.mxu0 0
    %343 = vmatprep.subr.bf16.mxu0 0
    %344 = vmatpush1.bf16.msra.mxu0 0
    %345 = vmatprep.subr.bf16.mxu0 0
    %346 = vmatpush1.bf16.msra.mxu0 0
    %347 = vmatprep.subr.bf16.mxu0 0
    %348 = vmatpush1.bf16.msra.mxu0 0
    %349 = vmatprep.subr.bf16.mxu0 0
    %350 = vmatpush1.bf16.msra.mxu0 0
    %351 = vmatprep.mubr.bf16.mxu0 0
    %352 = vmatmul.mubr.bf16.gmra.mrb[0].mxu0 %v142
    %v353 = vpop.f32.mrb[0].mxu0
    %v354 = vadd.f32 0.0, %v353
    %v355 = vpop.f32.mrb[0].mxu0
    %v356 = vadd.f32 0.0, %v355
    %v357 = vpop.f32.mrb[0].mxu0
    %v358 = vpop.f32.mrb[0].mxu0
    %359 = vdwg.mxu0
    %360 = vmatprep.subr.bf16.mxu0 %v176
    %361 = vmatpush1.bf16.msra.mxu0 %v173
    %362 = vmatprep.subr.bf16.mxu0 0
    %363 = vmatpush1.bf16.msra.mxu0 0
    %364 = vmatprep.subr.bf16.mxu0 0
    %365 = vmatpush1.bf16.msra.mxu0 0
    %366 = vmatprep.subr.bf16.mxu0 0
    %367 = vmatpush1.bf16.msra.mxu0 0
    %368 = vmatprep.subr.bf16.mxu0 0
    %369 = vmatpush1.bf16.msra.mxu0 0
    %370 = vmatprep.subr.bf16.mxu0 0
    %371 = vmatpush1.bf16.msra.mxu0 0
    %372 = vmatprep.subr.bf16.mxu0 0
    %373 = vmatpush1.bf16.msra.mxu0 0
    %374 = vmatprep.subr.bf16.mxu0 0
    %375 = vmatpush1.bf16.msra.mxu0 0
    %376 = vmatprep.subr.bf16.mxu0 0
    %377 = vmatpush1.bf16.msra.mxu0 0
    %378 = vmatprep.subr.bf16.mxu0 0
    %379 = vmatpush1.bf16.msra.mxu0 0
    %380 = vmatprep.subr.bf16.mxu0 0
    %381 = vmatpush1.bf16.msra.mxu0 0
    %382 = vmatprep.subr.bf16.mxu0 0
    %383 = vmatpush1.bf16.msra.mxu0 0
    %384 = vmatprep.subr.bf16.mxu0 0
    %385 = vmatpush1.bf16.msra.mxu0 0
    %386 = vmatprep.subr.bf16.mxu0 0
    %387 = vmatpush1.bf16.msra.mxu0 0
    %388 = vmatprep.subr.bf16.mxu0 0
    %389 = vmatpush1.bf16.msra.mxu0 0
    %390 = vmatprep.subr.bf16.mxu0 0
    %391 = vmatpush1.bf16.msra.mxu0 0
    %392 = vmatprep.mubr.bf16.mxu0 0
    %393 = vmatmul.mubr.bf16.gmra.mrb[0].mxu0 %v142
    %v394 = vpop.f32.mrb[0].mxu0
    %v395 = vadd.f32 0.0, %v394
    %v396 = vpop.f32.mrb[0].mxu0
    %v397 = vadd.f32 0.0, %v396
    %v398 = vpop.f32.mrb[0].mxu0
    %v399 = vpop.f32.mrb[0].mxu0
    %400 = vdwg.mxu0
    %401 = vmatprep.subr.bf16.mxu0 %v182
    %402 = vmatpush1.bf16.msra.mxu0 %v179
    %403 = vmatprep.subr.bf16.mxu0 0
    %404 = vmatpush1.bf16.msra.mxu0 0
    %405 = vmatprep.subr.bf16.mxu0 0
    %406 = vmatpush1.bf16.msra.mxu0 0
    %407 = vmatprep.subr.bf16.mxu0 0
    %408 = vmatpush1.bf16.msra.mxu0 0
    %409 = vmatprep.subr.bf16.mxu0 0
    %410 = vmatpush1.bf16.msra.mxu0 0
    %411 = vmatprep.subr.bf16.mxu0 0
    %412 = vmatpush1.bf16.msra.mxu0 0
    %413 = vmatprep.subr.bf16.mxu0 0
    %414 = vmatpush1.bf16.msra.mxu0 0
    %415 = vmatprep.subr.bf16.mxu0 0
    %416 = vmatpush1.bf16.msra.mxu0 0
    %417 = vmatprep.subr.bf16.mxu0 0
    %418 = vmatpush1.bf16.msra.mxu0 0
    %419 = vmatprep.subr.bf16.mxu0 0
    %420 = vmatpush1.bf16.msra.mxu0 0
    %421 = vmatprep.subr.bf16.mxu0 0
    %422 = vmatpush1.bf16.msra.mxu0 0
    %423 = vmatprep.subr.bf16.mxu0 0
    %424 = vmatpush1.bf16.msra.mxu0 0
    %425 = vmatprep.subr.bf16.mxu0 0
    %426 = vmatpush1.bf16.msra.mxu0 0
    %427 = vmatprep.subr.bf16.mxu0 0
    %428 = vmatpush1.bf16.msra.mxu0 0
    %429 = vmatprep.subr.bf16.mxu0 0
    %430 = vmatpush1.bf16.msra.mxu0 0
    %431 = vmatprep.subr.bf16.mxu0 0
    %432 = vmatpush1.bf16.msra.mxu0 0
    %433 = vmatprep.mubr.bf16.mxu0 0
    %434 = vmatmul.mubr.bf16.gmra.mrb[0].mxu0 %v142
    %v435 = vpop.f32.mrb[0].mxu0
    %v436 = vadd.f32 0.0, %v435
    %v437 = vpop.f32.mrb[0].mxu0
    %v438 = vadd.f32 0.0, %v437
    %v439 = vpop.f32.mrb[0].mxu0
    %v440 = vpop.f32.mrb[0].mxu0
    %441 = vdwg.mxu0
    %442 = vmatprep.subr.bf16.mxu0 %v188
    %443 = vmatpush1.bf16.msra.mxu0 %v185
    %444 = vmatprep.subr.bf16.mxu0 0
    %445 = vmatpush1.bf16.msra.mxu0 0
    %446 = vmatprep.subr.bf16.mxu0 0
    %447 = vmatpush1.bf16.msra.mxu0 0
    %448 = vmatprep.subr.bf16.mxu0 0
    %449 = vmatpush1.bf16.msra.mxu0 0
    %450 = vmatprep.subr.bf16.mxu0 0
    %451 = vmatpush1.bf16.msra.mxu0 0
    %452 = vmatprep.subr.bf16.mxu0 0
    %453 = vmatpush1.bf16.msra.mxu0 0
    %454 = vmatprep.subr.bf16.mxu0 0
    %455 = vmatpush1.bf16.msra.mxu0 0
    %456 = vmatprep.subr.bf16.mxu0 0
    %457 = vmatpush1.bf16.msra.mxu0 0
    %458 = vmatprep.subr.bf16.mxu0 0
    %459 = vmatpush1.bf16.msra.mxu0 0
    %460 = vmatprep.subr.bf16.mxu0 0
    %461 = vmatpush1.bf16.msra.mxu0 0
    %462 = vmatprep.subr.bf16.mxu0 0
    %463 = vmatpush1.bf16.msra.mxu0 0
    %464 = vmatprep.subr.bf16.mxu0 0
    %465 = vmatpush1.bf16.msra.mxu0 0
    %466 = vmatprep.subr.bf16.mxu0 0
    %467 = vmatpush1.bf16.msra.mxu0 0
    %468 = vmatprep.subr.bf16.mxu0 0
    %469 = vmatpush1.bf16.msra.mxu0 0
    %470 = vmatprep.subr.bf16.mxu0 0
    %471 = vmatpush1.bf16.msra.mxu0 0
    %472 = vmatprep.subr.bf16.mxu0 0
    %473 = vmatpush1.bf16.msra.mxu0 0
    %474 = vmatprep.mubr.bf16.mxu0 0
    %475 = vmatmul.mubr.bf16.gmra.mrb[0].mxu0 %v142
    %v476 = vpop.f32.mrb[0].mxu0
    %v477 = vadd.f32 0.0, %v476
    %v478 = vpop.f32.mrb[0].mxu0
    %v479 = vadd.f32 0.0, %v478
    %v480 = vpop.f32.mrb[0].mxu0
    %v481 = vpop.f32.mrb[0].mxu0
    %482 = vdwg.mxu0
    %483 = vmatprep.subr.bf16.mxu0 %v194
    %484 = vmatpush1.bf16.msra.mxu0 %v191
    %485 = vmatprep.subr.bf16.mxu0 0
    %486 = vmatpush1.bf16.msra.mxu0 0
    %487 = vmatprep.subr.bf16.mxu0 0
    %488 = vmatpush1.bf16.msra.mxu0 0
    %489 = vmatprep.subr.bf16.mxu0 0
    %490 = vmatpush1.bf16.msra.mxu0 0
    %491 = vmatprep.subr.bf16.mxu0 0
    %492 = vmatpush1.bf16.msra.mxu0 0
    %493 = vmatprep.subr.bf16.mxu0 0
    %494 = vmatpush1.bf16.msra.mxu0 0
    %495 = vmatprep.subr.bf16.mxu0 0
    %496 = vmatpush1.bf16.msra.mxu0 0
    %497 = vmatprep.subr.bf16.mxu0 0
    %498 = vmatpush1.bf16.msra.mxu0 0
    %499 = vmatprep.subr.bf16.mxu0 0
    %500 = vmatpush1.bf16.msra.mxu0 0
    %501 = vmatprep.subr.bf16.mxu0 0
    %502 = vmatpush1.bf16.msra.mxu0 0
    %503 = vmatprep.subr.bf16.mxu0 0
    %504 = vmatpush1.bf16.msra.mxu0 0
    %505 = vmatprep.subr.bf16.mxu0 0
    %506 = vmatpush1.bf16.msra.mxu0 0
    %507 = vmatprep.subr.bf16.mxu0 0
    %508 = vmatpush1.bf16.msra.mxu0 0
    %509 = vmatprep.subr.bf16.mxu0 0
    %510 = vmatpush1.bf16.msra.mxu0 0
    %511 = vmatprep.subr.bf16.mxu0 0
    %512 = vmatpush1.bf16.msra.mxu0 0
    %513 = vmatprep.subr.bf16.mxu0 0
    %514 = vmatpush1.bf16.msra.mxu0 0
    %515 = vmatprep.mubr.bf16.mxu0 0
    %516 = vmatmul.mubr.bf16.gmra.mrb[0].mxu0 %v142
    %v517 = vpop.f32.mrb[0].mxu0
    %v518 = vadd.f32 0.0, %v517
    %v519 = vpop.f32.mrb[0].mxu0
    %v520 = vadd.f32 0.0, %v519
    %v521 = vpop.f32.mrb[0].mxu0
    %v522 = vpop.f32.mrb[0].mxu0
    %523 = vdwg.mxu0
    %v524 = vmul.f32 %v231, 0.01
    %v525 = vmul.f32 %v233, 0.01
    %v526 = vmul.f32 %v272, 0.01
    %v527 = vmul.f32 %v274, 0.01
    %v528 = vmul.f32 %v313, 0.01
    %v529 = vmul.f32 %v315, 0.01
    %v530 = vmul.f32 %v354, 0.01
    %v531 = vmul.f32 %v356, 0.01
    %v532 = vmul.f32 %v395, 0.01
    %v533 = vmul.f32 %v397, 0.01
    %v534 = vmul.f32 %v436, 0.01
    %v535 = vmul.f32 %v438, 0.01
    %v536 = vmul.f32 %v477, 0.01
    %v537 = vmul.f32 %v479, 0.01
    %v538 = vmul.f32 %v518, 0.01
    %v539 = vmul.f32 %v520, 0.01
    %v540 = vmax.f32 %v231, %v524
    %v541 = vmax.f32 %v233, %v525
    %v542 = vmax.f32 %v272, %v526
    %v543 = vmax.f32 %v274, %v527
    %v544 = vmax.f32 %v313, %v528
    %v545 = vmax.f32 %v315, %v529
    %v546 = vmax.f32 %v354, %v530
    %v547 = vmax.f32 %v356, %v531
    %v548 = vmax.f32 %v395, %v532
    %v549 = vmax.f32 %v397, %v533
    %v550 = vmax.f32 %v436, %v534
    %v551 = vmax.f32 %v438, %v535
    %v552 = vmax.f32 %v477, %v536
    %v553 = vmax.f32 %v479, %v537
    %v554 = vmax.f32 %v518, %v538
    %v555 = vmax.f32 %v520, %v539
    %v556 = vpack.c.bf16 %v540, %v540
    %v557 = vpack.c.bf16 %v541, %v541
    %v558 = vpack.c.bf16 %v542, %v542
    %v559 = vpack.c.bf16 %v543, %v543
    %v560 = vpack.c.bf16 %v544, %v544
    %v561 = vpack.c.bf16 %v545, %v545
    %v562 = vpack.c.bf16 %v546, %v546
    %v563 = vpack.c.bf16 %v547, %v547
    %v564 = vpack.c.bf16 %v548, %v548
    %v565 = vpack.c.bf16 %v549, %v549
    %v566 = vpack.c.bf16 %v550, %v550
    %v567 = vpack.c.bf16 %v551, %v551
    %v568 = vpack.c.bf16 %v552, %v552
    %v569 = vpack.c.bf16 %v553, %v553
    %v570 = vpack.c.bf16 %v554, %v554
    %v571 = vpack.c.bf16 %v555, %v555
    %v572 = vld [vmem:[#allocation7] sm:$0xff]
    %v573 = vld [vmem:[#allocation7 + $0x8] sm:$0xff]
    %v574 = vld [vmem:[#allocation7 + $0x10] sm:$0xff]
    %v575 = vld [vmem:[#allocation7 + $0x18] sm:$0xff]
    %v576 = vld [vmem:[#allocation7 + $0x20] sm:$0xff]
    %v577 = vld [vmem:[#allocation7 + $0x28] sm:$0xff]
    %v578 = vld [vmem:[#allocation7 + $0x30] sm:$0xff]
    %v579 = vld [vmem:[#allocation7 + $0x38] sm:$0xff]
    %v580 = vld [vmem:[#allocation7 + $0x40] sm:$0xff]
    %v581 = vld [vmem:[#allocation7 + $0x48] sm:$0xff]
    %v582 = vld [vmem:[#allocation7 + $0x50] sm:$0xff]
    %v583 = vld [vmem:[#allocation7 + $0x58] sm:$0xff]
    %v584 = vld [vmem:[#allocation7 + $0x60] sm:$0xff]
    %v585 = vld [vmem:[#allocation7 + $0x68] sm:$0xff]
    %v586 = vld [vmem:[#allocation7 + $0x70] sm:$0xff]
    %v587 = vld [vmem:[#allocation7 + $0x78] sm:$0xff]
    %v588 = vld [vmem:[#allocation7 + $0x80] sm:$0xff]
    %v589 = vld [vmem:[#allocation7 + $0x88] sm:$0xff]
    %v590 = vld [vmem:[#allocation7 + $0x90] sm:$0xff]
    %v591 = vld [vmem:[#allocation7 + $0x98] sm:$0xff]
    %v592 = vld [vmem:[#allocation7 + $0xa0] sm:$0xff]
    %v593 = vld [vmem:[#allocation7 + $0xa8] sm:$0xff]
    %v594 = vld [vmem:[#allocation7 + $0xb0] sm:$0xff]
    %v595 = vld [vmem:[#allocation7 + $0xb8] sm:$0xff]
    %v596 = vld [vmem:[#allocation7 + $0xc0] sm:$0xff]
    %v597 = vld [vmem:[#allocation7 + $0xc8] sm:$0xff]
    %v598 = vld [vmem:[#allocation7 + $0xd0] sm:$0xff]
    %v599 = vld [vmem:[#allocation7 + $0xd8] sm:$0xff]
    %v600 = vld [vmem:[#allocation7 + $0xe0] sm:$0xff]
    %v601 = vld [vmem:[#allocation7 + $0xe8] sm:$0xff]
    %v602 = vld [vmem:[#allocation7 + $0xf0] sm:$0xff]
    %v603 = vld [vmem:[#allocation7 + $0xf8] sm:$0xff]
    %v604 = vld [vmem:[#allocation7 + $0x100] sm:$0xff]
    %v605 = vld [vmem:[#allocation7 + $0x108] sm:$0xff]
    %v606 = vld [vmem:[#allocation7 + $0x110] sm:$0xff]
    %v607 = vld [vmem:[#allocation7 + $0x118] sm:$0xff]
    %v608 = vld [vmem:[#allocation7 + $0x120] sm:$0xff]
    %v609 = vld [vmem:[#allocation7 + $0x128] sm:$0xff]
    %v610 = vld [vmem:[#allocation7 + $0x130] sm:$0xff]
    %v611 = vld [vmem:[#allocation7 + $0x138] sm:$0xff]
    %v612 = vld [vmem:[#allocation7 + $0x140] sm:$0xff]
    %v613 = vld [vmem:[#allocation7 + $0x148] sm:$0xff]
    %v614 = vld [vmem:[#allocation7 + $0x150] sm:$0xff]
    %v615 = vld [vmem:[#allocation7 + $0x158] sm:$0xff]
    %v616 = vld [vmem:[#allocation7 + $0x160] sm:$0xff]
    %v617 = vld [vmem:[#allocation7 + $0x168] sm:$0xff]
    %v618 = vld [vmem:[#allocation7 + $0x170] sm:$0xff]
    %v619 = vld [vmem:[#allocation7 + $0x178] sm:$0xff]
    %v620 = vld [vmem:[#allocation7 + $0x180] sm:$0xff]
    %v621 = vld [vmem:[#allocation7 + $0x188] sm:$0xff]
    %v622 = vld [vmem:[#allocation7 + $0x190] sm:$0xff]
    %v623 = vld [vmem:[#allocation7 + $0x198] sm:$0xff]
    %v624 = vld [vmem:[#allocation7 + $0x1a0] sm:$0xff]
    %v625 = vld [vmem:[#allocation7 + $0x1a8] sm:$0xff]
    %v626 = vld [vmem:[#allocation7 + $0x1b0] sm:$0xff]
    %v627 = vld [vmem:[#allocation7 + $0x1b8] sm:$0xff]
    %v628 = vld [vmem:[#allocation7 + $0x1c0] sm:$0xff]
    %v629 = vld [vmem:[#allocation7 + $0x1c8] sm:$0xff]
    %v630 = vld [vmem:[#allocation7 + $0x1d0] sm:$0xff]
    %v631 = vld [vmem:[#allocation7 + $0x1d8] sm:$0xff]
    %v632 = vld [vmem:[#allocation7 + $0x1e0] sm:$0xff]
    %v633 = vld [vmem:[#allocation7 + $0x1e8] sm:$0xff]
    %v634 = vld [vmem:[#allocation7 + $0x1f0] sm:$0xff]
    %v635 = vld [vmem:[#allocation7 + $0x1f8] sm:$0xff]
    %v636 = vld [vmem:[#allocation7 + $0x200] sm:$0xff]
    %v637 = vld [vmem:[#allocation7 + $0x208] sm:$0xff]
    %v638 = vld [vmem:[#allocation7 + $0x210] sm:$0xff]
    %v639 = vld [vmem:[#allocation7 + $0x218] sm:$0xff]
    %v640 = vld [vmem:[#allocation7 + $0x220] sm:$0xff]
    %v641 = vld [vmem:[#allocation7 + $0x228] sm:$0xff]
    %v642 = vld [vmem:[#allocation7 + $0x230] sm:$0xff]
    %v643 = vld [vmem:[#allocation7 + $0x238] sm:$0xff]
    %v644 = vld [vmem:[#allocation7 + $0x240] sm:$0xff]
    %v645 = vld [vmem:[#allocation7 + $0x248] sm:$0xff]
    %v646 = vld [vmem:[#allocation7 + $0x250] sm:$0xff]
    %v647 = vld [vmem:[#allocation7 + $0x258] sm:$0xff]
    %v648 = vld [vmem:[#allocation7 + $0x260] sm:$0xff]
    %v649 = vld [vmem:[#allocation7 + $0x268] sm:$0xff]
    %v650 = vld [vmem:[#allocation7 + $0x270] sm:$0xff]
    %v651 = vld [vmem:[#allocation7 + $0x278] sm:$0xff]
    %v652 = vld [vmem:[#allocation7 + $0x280] sm:$0xff]
    %v653 = vld [vmem:[#allocation7 + $0x288] sm:$0xff]
    %v654 = vld [vmem:[#allocation7 + $0x290] sm:$0xff]
    %v655 = vld [vmem:[#allocation7 + $0x298] sm:$0xff]
    %v656 = vld [vmem:[#allocation7 + $0x2a0] sm:$0xff]
    %v657 = vld [vmem:[#allocation7 + $0x2a8] sm:$0xff]
    %v658 = vld [vmem:[#allocation7 + $0x2b0] sm:$0xff]
    %v659 = vld [vmem:[#allocation7 + $0x2b8] sm:$0xff]
    %v660 = vld [vmem:[#allocation7 + $0x2c0] sm:$0xff]
    %v661 = vld [vmem:[#allocation7 + $0x2c8] sm:$0xff]
    %v662 = vld [vmem:[#allocation7 + $0x2d0] sm:$0xff]
    %v663 = vld [vmem:[#allocation7 + $0x2d8] sm:$0xff]
    %v664 = vld [vmem:[#allocation7 + $0x2e0] sm:$0xff]
    %v665 = vld [vmem:[#allocation7 + $0x2e8] sm:$0xff]
    %v666 = vld [vmem:[#allocation7 + $0x2f0] sm:$0xff]
    %v667 = vld [vmem:[#allocation7 + $0x2f8] sm:$0xff]
    %v668 = vld [vmem:[#allocation7 + $0x300] sm:$0xff]
    %v669 = vld [vmem:[#allocation7 + $0x308] sm:$0xff]
    %v670 = vld [vmem:[#allocation7 + $0x310] sm:$0xff]
    %v671 = vld [vmem:[#allocation7 + $0x318] sm:$0xff]
    %v672 = vld [vmem:[#allocation7 + $0x320] sm:$0xff]
    %v673 = vld [vmem:[#allocation7 + $0x328] sm:$0xff]
    %v674 = vld [vmem:[#allocation7 + $0x330] sm:$0xff]
    %v675 = vld [vmem:[#allocation7 + $0x338] sm:$0xff]
    %v676 = vld [vmem:[#allocation7 + $0x340] sm:$0xff]
    %v677 = vld [vmem:[#allocation7 + $0x348] sm:$0xff]
    %v678 = vld [vmem:[#allocation7 + $0x350] sm:$0xff]
    %v679 = vld [vmem:[#allocation7 + $0x358] sm:$0xff]
    %v680 = vld [vmem:[#allocation7 + $0x360] sm:$0xff]
    %v681 = vld [vmem:[#allocation7 + $0x368] sm:$0xff]
    %v682 = vld [vmem:[#allocation7 + $0x370] sm:$0xff]
    %v683 = vld [vmem:[#allocation7 + $0x378] sm:$0xff]
    %v684 = vld [vmem:[#allocation7 + $0x380] sm:$0xff]
    %v685 = vld [vmem:[#allocation7 + $0x388] sm:$0xff]
    %v686 = vld [vmem:[#allocation7 + $0x390] sm:$0xff]
    %v687 = vld [vmem:[#allocation7 + $0x398] sm:$0xff]
    %v688 = vld [vmem:[#allocation7 + $0x3a0] sm:$0xff]
    %v689 = vld [vmem:[#allocation7 + $0x3a8] sm:$0xff]
    %v690 = vld [vmem:[#allocation7 + $0x3b0] sm:$0xff]
    %v691 = vld [vmem:[#allocation7 + $0x3b8] sm:$0xff]
    %v692 = vld [vmem:[#allocation7 + $0x3c0] sm:$0xff]
    %v693 = vld [vmem:[#allocation7 + $0x3c8] sm:$0xff]
    %v694 = vld [vmem:[#allocation7 + $0x3d0] sm:$0xff]
    %v695 = vld [vmem:[#allocation7 + $0x3d8] sm:$0xff]
    %v696 = vld [vmem:[#allocation7 + $0x3e0] sm:$0xff]
    %v697 = vld [vmem:[#allocation7 + $0x3e8] sm:$0xff]
    %v698 = vld [vmem:[#allocation7 + $0x3f0] sm:$0xff]
    %v699 = vld [vmem:[#allocation7 + $0x3f8] sm:$0xff]
    %v700 = vld [vmem:[#allocation7 + $0x400] sm:$0xff]
    %v701 = vld [vmem:[#allocation7 + $0x408] sm:$0xff]
    %v702 = vld [vmem:[#allocation7 + $0x410] sm:$0xff]
    %v703 = vld [vmem:[#allocation7 + $0x418] sm:$0xff]
    %v704 = vld [vmem:[#allocation7 + $0x420] sm:$0xff]
    %v705 = vld [vmem:[#allocation7 + $0x428] sm:$0xff]
    %v706 = vld [vmem:[#allocation7 + $0x430] sm:$0xff]
    %v707 = vld [vmem:[#allocation7 + $0x438] sm:$0xff]
    %v708 = vld [vmem:[#allocation7 + $0x440] sm:$0xff]
    %v709 = vld [vmem:[#allocation7 + $0x448] sm:$0xff]
    %v710 = vld [vmem:[#allocation7 + $0x450] sm:$0xff]
    %v711 = vld [vmem:[#allocation7 + $0x458] sm:$0xff]
    %v712 = vld [vmem:[#allocation7 + $0x460] sm:$0xff]
    %v713 = vld [vmem:[#allocation7 + $0x468] sm:$0xff]
    %v714 = vld [vmem:[#allocation7 + $0x470] sm:$0xff]
    %v715 = vld [vmem:[#allocation7 + $0x478] sm:$0xff]
    %v716 = vld [vmem:[#allocation7 + $0x480] sm:$0xff]
    %v717 = vld [vmem:[#allocation7 + $0x488] sm:$0xff]
    %v718 = vld [vmem:[#allocation7 + $0x490] sm:$0xff]
    %v719 = vld [vmem:[#allocation7 + $0x498] sm:$0xff]
    %v720 = vld [vmem:[#allocation7 + $0x4a0] sm:$0xff]
    %v721 = vld [vmem:[#allocation7 + $0x4a8] sm:$0xff]
    %v722 = vld [vmem:[#allocation7 + $0x4b0] sm:$0xff]
    %v723 = vld [vmem:[#allocation7 + $0x4b8] sm:$0xff]
    %v724 = vld [vmem:[#allocation7 + $0x4c0] sm:$0xff]
    %v725 = vld [vmem:[#allocation7 + $0x4c8] sm:$0xff]
    %v726 = vld [vmem:[#allocation7 + $0x4d0] sm:$0xff]
    %v727 = vld [vmem:[#allocation7 + $0x4d8] sm:$0xff]
    %v728 = vld [vmem:[#allocation7 + $0x4e0] sm:$0xff]
    %v729 = vld [vmem:[#allocation7 + $0x4e8] sm:$0xff]
    %v730 = vld [vmem:[#allocation7 + $0x4f0] sm:$0xff]
    %v731 = vld [vmem:[#allocation7 + $0x4f8] sm:$0xff]
    %v732 = vld [vmem:[#allocation7 + $0x500] sm:$0xff]
    %v733 = vld [vmem:[#allocation7 + $0x508] sm:$0xff]
    %v734 = vld [vmem:[#allocation7 + $0x510] sm:$0xff]
    %v735 = vld [vmem:[#allocation7 + $0x518] sm:$0xff]
    %v736 = vld [vmem:[#allocation7 + $0x520] sm:$0xff]
    %v737 = vld [vmem:[#allocation7 + $0x528] sm:$0xff]
    %v738 = vld [vmem:[#allocation7 + $0x530] sm:$0xff]
    %v739 = vld [vmem:[#allocation7 + $0x538] sm:$0xff]
    %v740 = vld [vmem:[#allocation7 + $0x540] sm:$0xff]
    %v741 = vld [vmem:[#allocation7 + $0x548] sm:$0xff]
    %v742 = vld [vmem:[#allocation7 + $0x550] sm:$0xff]
    %v743 = vld [vmem:[#allocation7 + $0x558] sm:$0xff]
    %v744 = vld [vmem:[#allocation7 + $0x560] sm:$0xff]
    %v745 = vld [vmem:[#allocation7 + $0x568] sm:$0xff]
    %v746 = vld [vmem:[#allocation7 + $0x570] sm:$0xff]
    %v747 = vld [vmem:[#allocation7 + $0x578] sm:$0xff]
    %v748 = vld [vmem:[#allocation7 + $0x580] sm:$0xff]
    %v749 = vld [vmem:[#allocation7 + $0x588] sm:$0xff]
    %v750 = vld [vmem:[#allocation7 + $0x590] sm:$0xff]
    %v751 = vld [vmem:[#allocation7 + $0x598] sm:$0xff]
    %v752 = vld [vmem:[#allocation7 + $0x5a0] sm:$0xff]
    %v753 = vld [vmem:[#allocation7 + $0x5a8] sm:$0xff]
    %v754 = vld [vmem:[#allocation7 + $0x5b0] sm:$0xff]
    %v755 = vld [vmem:[#allocation7 + $0x5b8] sm:$0xff]
    %v756 = vld [vmem:[#allocation7 + $0x5c0] sm:$0xff]
    %v757 = vld [vmem:[#allocation7 + $0x5c8] sm:$0xff]
    %v758 = vld [vmem:[#allocation7 + $0x5d0] sm:$0xff]
    %v759 = vld [vmem:[#allocation7 + $0x5d8] sm:$0xff]
    %v760 = vld [vmem:[#allocation7 + $0x5e0] sm:$0xff]
    %v761 = vld [vmem:[#allocation7 + $0x5e8] sm:$0xff]
    %v762 = vld [vmem:[#allocation7 + $0x5f0] sm:$0xff]
    %v763 = vld [vmem:[#allocation7 + $0x5f8] sm:$0xff]
    %v764 = vld [vmem:[#allocation7 + $0x600] sm:$0xff]
    %v765 = vld [vmem:[#allocation7 + $0x608] sm:$0xff]
    %v766 = vld [vmem:[#allocation7 + $0x610] sm:$0xff]
    %v767 = vld [vmem:[#allocation7 + $0x618] sm:$0xff]
    %v768 = vld [vmem:[#allocation7 + $0x620] sm:$0xff]
    %v769 = vld [vmem:[#allocation7 + $0x628] sm:$0xff]
    %v770 = vld [vmem:[#allocation7 + $0x630] sm:$0xff]
    %v771 = vld [vmem:[#allocation7 + $0x638] sm:$0xff]
    %v772 = vld [vmem:[#allocation7 + $0x640] sm:$0xff]
    %v773 = vld [vmem:[#allocation7 + $0x648] sm:$0xff]
    %v774 = vld [vmem:[#allocation7 + $0x650] sm:$0xff]
    %v775 = vld [vmem:[#allocation7 + $0x658] sm:$0xff]
    %v776 = vld [vmem:[#allocation7 + $0x660] sm:$0xff]
    %v777 = vld [vmem:[#allocation7 + $0x668] sm:$0xff]
    %v778 = vld [vmem:[#allocation7 + $0x670] sm:$0xff]
    %v779 = vld [vmem:[#allocation7 + $0x678] sm:$0xff]
    %v780 = vld [vmem:[#allocation7 + $0x680] sm:$0xff]
    %v781 = vld [vmem:[#allocation7 + $0x688] sm:$0xff]
    %v782 = vld [vmem:[#allocation7 + $0x690] sm:$0xff]
    %v783 = vld [vmem:[#allocation7 + $0x698] sm:$0xff]
    %v784 = vld [vmem:[#allocation7 + $0x6a0] sm:$0xff]
    %v785 = vld [vmem:[#allocation7 + $0x6a8] sm:$0xff]
    %v786 = vld [vmem:[#allocation7 + $0x6b0] sm:$0xff]
    %v787 = vld [vmem:[#allocation7 + $0x6b8] sm:$0xff]
    %v788 = vld [vmem:[#allocation7 + $0x6c0] sm:$0xff]
    %v789 = vld [vmem:[#allocation7 + $0x6c8] sm:$0xff]
    %v790 = vld [vmem:[#allocation7 + $0x6d0] sm:$0xff]
    %v791 = vld [vmem:[#allocation7 + $0x6d8] sm:$0xff]
    %v792 = vld [vmem:[#allocation7 + $0x6e0] sm:$0xff]
    %v793 = vld [vmem:[#allocation7 + $0x6e8] sm:$0xff]
    %v794 = vld [vmem:[#allocation7 + $0x6f0] sm:$0xff]
    %v795 = vld [vmem:[#allocation7 + $0x6f8] sm:$0xff]
    %v796 = vld [vmem:[#allocation7 + $0x700] sm:$0xff]
    %v797 = vld [vmem:[#allocation7 + $0x708] sm:$0xff]
    %v798 = vld [vmem:[#allocation7 + $0x710] sm:$0xff]
    %v799 = vld [vmem:[#allocation7 + $0x718] sm:$0xff]
    %v800 = vld [vmem:[#allocation7 + $0x720] sm:$0xff]
    %v801 = vld [vmem:[#allocation7 + $0x728] sm:$0xff]
    %v802 = vld [vmem:[#allocation7 + $0x730] sm:$0xff]
    %v803 = vld [vmem:[#allocation7 + $0x738] sm:$0xff]
    %v804 = vld [vmem:[#allocation7 + $0x740] sm:$0xff]
    %v805 = vld [vmem:[#allocation7 + $0x748] sm:$0xff]
    %v806 = vld [vmem:[#allocation7 + $0x750] sm:$0xff]
    %v807 = vld [vmem:[#allocation7 + $0x758] sm:$0xff]
    %v808 = vld [vmem:[#allocation7 + $0x760] sm:$0xff]
    %v809 = vld [vmem:[#allocation7 + $0x768] sm:$0xff]
    %v810 = vld [vmem:[#allocation7 + $0x770] sm:$0xff]
    %v811 = vld [vmem:[#allocation7 + $0x778] sm:$0xff]
    %v812 = vld [vmem:[#allocation7 + $0x780] sm:$0xff]
    %v813 = vld [vmem:[#allocation7 + $0x788] sm:$0xff]
    %v814 = vld [vmem:[#allocation7 + $0x790] sm:$0xff]
    %v815 = vld [vmem:[#allocation7 + $0x798] sm:$0xff]
    %v816 = vld [vmem:[#allocation7 + $0x7a0] sm:$0xff]
    %v817 = vld [vmem:[#allocation7 + $0x7a8] sm:$0xff]
    %v818 = vld [vmem:[#allocation7 + $0x7b0] sm:$0xff]
    %v819 = vld [vmem:[#allocation7 + $0x7b8] sm:$0xff]
    %v820 = vld [vmem:[#allocation7 + $0x7c0] sm:$0xff]
    %v821 = vld [vmem:[#allocation7 + $0x7c8] sm:$0xff]
    %v822 = vld [vmem:[#allocation7 + $0x7d0] sm:$0xff]
    %v823 = vld [vmem:[#allocation7 + $0x7d8] sm:$0xff]
    %v824 = vld [vmem:[#allocation7 + $0x7e0] sm:$0xff]
    %v825 = vld [vmem:[#allocation7 + $0x7e8] sm:$0xff]
    %v826 = vld [vmem:[#allocation7 + $0x7f0] sm:$0xff]
    %v827 = vld [vmem:[#allocation7 + $0x7f8] sm:$0xff]
    %v828 = vld [vmem:[%s3] sm:$0x3]
    %v830 = vlaneseq
    %v831 = vshrl.u32 %v830, 7
    %v832 = vsub.s32 0, %v831
    %v833 = vrot.slane %v828, %v832
    %v834 = vlaneseq
    %v835 = vshrl.u32 %v834, 7
    %v836 = vsub.s32 1, %v835
    %v837 = vrot.slane %v828, %v836
    %v1096 = vunpack.c.l.b16 %v572
    %v1097 = vunpack.c.h.b16 %v572
    %v1098 = vunpack.c.l.b16 %v573
    %v1099 = vunpack.c.h.b16 %v573
    %v1100 = vunpack.c.l.b16 %v574
    %v1101 = vunpack.c.h.b16 %v574
    %v1102 = vunpack.c.l.b16 %v575
    %v1103 = vunpack.c.h.b16 %v575
    %v1104 = vunpack.c.l.b16 %v576
    %v1105 = vunpack.c.h.b16 %v576
    %v1106 = vunpack.c.l.b16 %v577
    %v1107 = vunpack.c.h.b16 %v577
    %v1108 = vunpack.c.l.b16 %v578
    %v1109 = vunpack.c.h.b16 %v578
    %v1110 = vunpack.c.l.b16 %v579
    %v1111 = vunpack.c.h.b16 %v579
    %v1112 = vunpack.c.l.b16 %v580
    %v1113 = vunpack.c.h.b16 %v580
    %v1114 = vunpack.c.l.b16 %v581
    %v1115 = vunpack.c.h.b16 %v581
    %v1116 = vunpack.c.l.b16 %v582
    %v1117 = vunpack.c.h.b16 %v582
    %v1118 = vunpack.c.l.b16 %v583
    %v1119 = vunpack.c.h.b16 %v583
    %v1120 = vunpack.c.l.b16 %v584
    %v1121 = vunpack.c.h.b16 %v584
    %v1122 = vunpack.c.l.b16 %v585
    %v1123 = vunpack.c.h.b16 %v585
    %v1124 = vunpack.c.l.b16 %v586
    %v1125 = vunpack.c.h.b16 %v586
    %v1126 = vunpack.c.l.b16 %v587
    %v1127 = vunpack.c.h.b16 %v587
    %v1128 = vunpack.c.l.b16 %v588
    %v1129 = vunpack.c.h.b16 %v588
    %v1130 = vunpack.c.l.b16 %v589
    %v1131 = vunpack.c.h.b16 %v589
    %v1132 = vunpack.c.l.b16 %v590
    %v1133 = vunpack.c.h.b16 %v590
    %v1134 = vunpack.c.l.b16 %v591
    %v1135 = vunpack.c.h.b16 %v591
    %v1136 = vunpack.c.l.b16 %v592
    %v1137 = vunpack.c.h.b16 %v592
    %v1138 = vunpack.c.l.b16 %v593
    %v1139 = vunpack.c.h.b16 %v593
    %v1140 = vunpack.c.l.b16 %v594
    %v1141 = vunpack.c.h.b16 %v594
    %v1142 = vunpack.c.l.b16 %v595
    %v1143 = vunpack.c.h.b16 %v595
    %v1144 = vunpack.c.l.b16 %v596
    %v1145 = vunpack.c.h.b16 %v596
    %v1146 = vunpack.c.l.b16 %v597
    %v1147 = vunpack.c.h.b16 %v597
    %v1148 = vunpack.c.l.b16 %v598
    %v1149 = vunpack.c.h.b16 %v598
    %v1150 = vunpack.c.l.b16 %v599
    %v1151 = vunpack.c.h.b16 %v599
    %v1152 = vunpack.c.l.b16 %v600
    %v1153 = vunpack.c.h.b16 %v600
    %v1154 = vunpack.c.l.b16 %v601
    %v1155 = vunpack.c.h.b16 %v601
    %v1156 = vunpack.c.l.b16 %v602
    %v1157 = vunpack.c.h.b16 %v602
    %v1158 = vunpack.c.l.b16 %v603
    %v1159 = vunpack.c.h.b16 %v603
    %v1160 = vunpack.c.l.b16 %v604
    %v1161 = vunpack.c.h.b16 %v604
    %v1162 = vunpack.c.l.b16 %v605
    %v1163 = vunpack.c.h.b16 %v605
    %v1164 = vunpack.c.l.b16 %v606
    %v1165 = vunpack.c.h.b16 %v606
    %v1166 = vunpack.c.l.b16 %v607
    %v1167 = vunpack.c.h.b16 %v607
    %v1168 = vunpack.c.l.b16 %v608
    %v1169 = vunpack.c.h.b16 %v608
    %v1170 = vunpack.c.l.b16 %v609
    %v1171 = vunpack.c.h.b16 %v609
    %v1172 = vunpack.c.l.b16 %v610
    %v1173 = vunpack.c.h.b16 %v610
    %v1174 = vunpack.c.l.b16 %v611
    %v1175 = vunpack.c.h.b16 %v611
    %v1176 = vunpack.c.l.b16 %v612
    %v1177 = vunpack.c.h.b16 %v612
    %v1178 = vunpack.c.l.b16 %v613
    %v1179 = vunpack.c.h.b16 %v613
    %v1180 = vunpack.c.l.b16 %v614
    %v1181 = vunpack.c.h.b16 %v614
    %v1182 = vunpack.c.l.b16 %v615
    %v1183 = vunpack.c.h.b16 %v615
    %v1184 = vunpack.c.l.b16 %v616
    %v1185 = vunpack.c.h.b16 %v616
    %v1186 = vunpack.c.l.b16 %v617
    %v1187 = vunpack.c.h.b16 %v617
    %v1188 = vunpack.c.l.b16 %v618
    %v1189 = vunpack.c.h.b16 %v618
    %v1190 = vunpack.c.l.b16 %v619
    %v1191 = vunpack.c.h.b16 %v619
    %v1192 = vunpack.c.l.b16 %v620
    %v1193 = vunpack.c.h.b16 %v620
    %v1194 = vunpack.c.l.b16 %v621
    %v1195 = vunpack.c.h.b16 %v621
    %v1196 = vunpack.c.l.b16 %v622
    %v1197 = vunpack.c.h.b16 %v622
    %v1198 = vunpack.c.l.b16 %v623
    %v1199 = vunpack.c.h.b16 %v623
    %v1200 = vunpack.c.l.b16 %v624
    %v1201 = vunpack.c.h.b16 %v624
    %v1202 = vunpack.c.l.b16 %v625
    %v1203 = vunpack.c.h.b16 %v625
    %v1204 = vunpack.c.l.b16 %v626
    %v1205 = vunpack.c.h.b16 %v626
    %v1206 = vunpack.c.l.b16 %v627
    %v1207 = vunpack.c.h.b16 %v627
    %v1208 = vunpack.c.l.b16 %v628
    %v1209 = vunpack.c.h.b16 %v628
    %v1210 = vunpack.c.l.b16 %v629
    %v1211 = vunpack.c.h.b16 %v629
    %v1212 = vunpack.c.l.b16 %v630
    %v1213 = vunpack.c.h.b16 %v630
    %v1214 = vunpack.c.l.b16 %v631
    %v1215 = vunpack.c.h.b16 %v631
    %v1216 = vunpack.c.l.b16 %v632
    %v1217 = vunpack.c.h.b16 %v632
    %v1218 = vunpack.c.l.b16 %v633
    %v1219 = vunpack.c.h.b16 %v633
    %v1220 = vunpack.c.l.b16 %v634
    %v1221 = vunpack.c.h.b16 %v634
    %v1222 = vunpack.c.l.b16 %v635
    %v1223 = vunpack.c.h.b16 %v635
    %v1224 = vunpack.c.l.b16 %v636
    %v1225 = vunpack.c.h.b16 %v636
    %v1226 = vunpack.c.l.b16 %v637
    %v1227 = vunpack.c.h.b16 %v637
    %v1228 = vunpack.c.l.b16 %v638
    %v1229 = vunpack.c.h.b16 %v638
    %v1230 = vunpack.c.l.b16 %v639
    %v1231 = vunpack.c.h.b16 %v639
    %v1232 = vunpack.c.l.b16 %v640
    %v1233 = vunpack.c.h.b16 %v640
    %v1234 = vunpack.c.l.b16 %v641
    %v1235 = vunpack.c.h.b16 %v641
    %v1236 = vunpack.c.l.b16 %v642
    %v1237 = vunpack.c.h.b16 %v642
    %v1238 = vunpack.c.l.b16 %v643
    %v1239 = vunpack.c.h.b16 %v643
    %v1240 = vunpack.c.l.b16 %v644
    %v1241 = vunpack.c.h.b16 %v644
    %v1242 = vunpack.c.l.b16 %v645
    %v1243 = vunpack.c.h.b16 %v645
    %v1244 = vunpack.c.l.b16 %v646
    %v1245 = vunpack.c.h.b16 %v646
    %v1246 = vunpack.c.l.b16 %v647
    %v1247 = vunpack.c.h.b16 %v647
    %v1248 = vunpack.c.l.b16 %v648
    %v1249 = vunpack.c.h.b16 %v648
    %v1250 = vunpack.c.l.b16 %v649
    %v1251 = vunpack.c.h.b16 %v649
    %v1252 = vunpack.c.l.b16 %v650
    %v1253 = vunpack.c.h.b16 %v650
    %v1254 = vunpack.c.l.b16 %v651
    %v1255 = vunpack.c.h.b16 %v651
    %v1256 = vunpack.c.l.b16 %v652
    %v1257 = vunpack.c.h.b16 %v652
    %v1258 = vunpack.c.l.b16 %v653
    %v1259 = vunpack.c.h.b16 %v653
    %v1260 = vunpack.c.l.b16 %v654
    %v1261 = vunpack.c.h.b16 %v654
    %v1262 = vunpack.c.l.b16 %v655
    %v1263 = vunpack.c.h.b16 %v655
    %v1264 = vunpack.c.l.b16 %v656
    %v1265 = vunpack.c.h.b16 %v656
    %v1266 = vunpack.c.l.b16 %v657
    %v1267 = vunpack.c.h.b16 %v657
    %v1268 = vunpack.c.l.b16 %v658
    %v1269 = vunpack.c.h.b16 %v658
    %v1270 = vunpack.c.l.b16 %v659
    %v1271 = vunpack.c.h.b16 %v659
    %v1272 = vunpack.c.l.b16 %v660
    %v1273 = vunpack.c.h.b16 %v660
    %v1274 = vunpack.c.l.b16 %v661
    %v1275 = vunpack.c.h.b16 %v661
    %v1276 = vunpack.c.l.b16 %v662
    %v1277 = vunpack.c.h.b16 %v662
    %v1278 = vunpack.c.l.b16 %v663
    %v1279 = vunpack.c.h.b16 %v663
    %v1280 = vunpack.c.l.b16 %v664
    %v1281 = vunpack.c.h.b16 %v664
    %v1282 = vunpack.c.l.b16 %v665
    %v1283 = vunpack.c.h.b16 %v665
    %v1284 = vunpack.c.l.b16 %v666
    %v1285 = vunpack.c.h.b16 %v666
    %v1286 = vunpack.c.l.b16 %v667
    %v1287 = vunpack.c.h.b16 %v667
    %v1288 = vunpack.c.l.b16 %v668
    %v1289 = vunpack.c.h.b16 %v668
    %v1290 = vunpack.c.l.b16 %v669
    %v1291 = vunpack.c.h.b16 %v669
    %v1292 = vunpack.c.l.b16 %v670
    %v1293 = vunpack.c.h.b16 %v670
    %v1294 = vunpack.c.l.b16 %v671
    %v1295 = vunpack.c.h.b16 %v671
    %v1296 = vunpack.c.l.b16 %v672
    %v1297 = vunpack.c.h.b16 %v672
    %v1298 = vunpack.c.l.b16 %v673
    %v1299 = vunpack.c.h.b16 %v673
    %v1300 = vunpack.c.l.b16 %v674
    %v1301 = vunpack.c.h.b16 %v674
    %v1302 = vunpack.c.l.b16 %v675
    %v1303 = vunpack.c.h.b16 %v675
    %v1304 = vunpack.c.l.b16 %v676
    %v1305 = vunpack.c.h.b16 %v676
    %v1306 = vunpack.c.l.b16 %v677
    %v1307 = vunpack.c.h.b16 %v677
    %v1308 = vunpack.c.l.b16 %v678
    %v1309 = vunpack.c.h.b16 %v678
    %v1310 = vunpack.c.l.b16 %v679
    %v1311 = vunpack.c.h.b16 %v679
    %v1312 = vunpack.c.l.b16 %v680
    %v1313 = vunpack.c.h.b16 %v680
    %v1314 = vunpack.c.l.b16 %v681
    %v1315 = vunpack.c.h.b16 %v681
    %v1316 = vunpack.c.l.b16 %v682
    %v1317 = vunpack.c.h.b16 %v682
    %v1318 = vunpack.c.l.b16 %v683
    %v1319 = vunpack.c.h.b16 %v683
    %v1320 = vunpack.c.l.b16 %v684
    %v1321 = vunpack.c.h.b16 %v684
    %v1322 = vunpack.c.l.b16 %v685
    %v1323 = vunpack.c.h.b16 %v685
    %v1324 = vunpack.c.l.b16 %v686
    %v1325 = vunpack.c.h.b16 %v686
    %v1326 = vunpack.c.l.b16 %v687
    %v1327 = vunpack.c.h.b16 %v687
    %v1328 = vunpack.c.l.b16 %v688
    %v1329 = vunpack.c.h.b16 %v688
    %v1330 = vunpack.c.l.b16 %v689
    %v1331 = vunpack.c.h.b16 %v689
    %v1332 = vunpack.c.l.b16 %v690
    %v1333 = vunpack.c.h.b16 %v690
    %v1334 = vunpack.c.l.b16 %v691
    %v1335 = vunpack.c.h.b16 %v691
    %v1336 = vunpack.c.l.b16 %v692
    %v1337 = vunpack.c.h.b16 %v692
    %v1338 = vunpack.c.l.b16 %v693
    %v1339 = vunpack.c.h.b16 %v693
    %v1340 = vunpack.c.l.b16 %v694
    %v1341 = vunpack.c.h.b16 %v694
    %v1342 = vunpack.c.l.b16 %v695
    %v1343 = vunpack.c.h.b16 %v695
    %v1344 = vunpack.c.l.b16 %v696
    %v1345 = vunpack.c.h.b16 %v696
    %v1346 = vunpack.c.l.b16 %v697
    %v1347 = vunpack.c.h.b16 %v697
    %v1348 = vunpack.c.l.b16 %v698
    %v1349 = vunpack.c.h.b16 %v698
    %v1350 = vunpack.c.l.b16 %v699
    %v1351 = vunpack.c.h.b16 %v699
    %v1352 = vunpack.c.l.b16 %v700
    %v1353 = vunpack.c.h.b16 %v700
    %v1354 = vunpack.c.l.b16 %v701
    %v1355 = vunpack.c.h.b16 %v701
    %v1356 = vunpack.c.l.b16 %v702
    %v1357 = vunpack.c.h.b16 %v702
    %v1358 = vunpack.c.l.b16 %v703
    %v1359 = vunpack.c.h.b16 %v703
    %v1360 = vunpack.c.l.b16 %v704
    %v1361 = vunpack.c.h.b16 %v704
    %v1362 = vunpack.c.l.b16 %v705
    %v1363 = vunpack.c.h.b16 %v705
    %v1364 = vunpack.c.l.b16 %v706
    %v1365 = vunpack.c.h.b16 %v706
    %v1366 = vunpack.c.l.b16 %v707
    %v1367 = vunpack.c.h.b16 %v707
    %v1368 = vunpack.c.l.b16 %v708
    %v1369 = vunpack.c.h.b16 %v708
    %v1370 = vunpack.c.l.b16 %v709
    %v1371 = vunpack.c.h.b16 %v709
    %v1372 = vunpack.c.l.b16 %v710
    %v1373 = vunpack.c.h.b16 %v710
    %v1374 = vunpack.c.l.b16 %v711
    %v1375 = vunpack.c.h.b16 %v711
    %v1376 = vunpack.c.l.b16 %v712
    %v1377 = vunpack.c.h.b16 %v712
    %v1378 = vunpack.c.l.b16 %v713
    %v1379 = vunpack.c.h.b16 %v713
    %v1380 = vunpack.c.l.b16 %v714
    %v1381 = vunpack.c.h.b16 %v714
    %v1382 = vunpack.c.l.b16 %v715
    %v1383 = vunpack.c.h.b16 %v715
    %v1384 = vunpack.c.l.b16 %v716
    %v1385 = vunpack.c.h.b16 %v716
    %v1386 = vunpack.c.l.b16 %v717
    %v1387 = vunpack.c.h.b16 %v717
    %v1388 = vunpack.c.l.b16 %v718
    %v1389 = vunpack.c.h.b16 %v718
    %v1390 = vunpack.c.l.b16 %v719
    %v1391 = vunpack.c.h.b16 %v719
    %v1392 = vunpack.c.l.b16 %v720
    %v1393 = vunpack.c.h.b16 %v720
    %v1394 = vunpack.c.l.b16 %v721
    %v1395 = vunpack.c.h.b16 %v721
    %v1396 = vunpack.c.l.b16 %v722
    %v1397 = vunpack.c.h.b16 %v722
    %v1398 = vunpack.c.l.b16 %v723
    %v1399 = vunpack.c.h.b16 %v723
    %v1400 = vunpack.c.l.b16 %v724
    %v1401 = vunpack.c.h.b16 %v724
    %v1402 = vunpack.c.l.b16 %v725
    %v1403 = vunpack.c.h.b16 %v725
    %v1404 = vunpack.c.l.b16 %v726
    %v1405 = vunpack.c.h.b16 %v726
    %v1406 = vunpack.c.l.b16 %v727
    %v1407 = vunpack.c.h.b16 %v727
    %v1408 = vunpack.c.l.b16 %v728
    %v1409 = vunpack.c.h.b16 %v728
    %v1410 = vunpack.c.l.b16 %v729
    %v1411 = vunpack.c.h.b16 %v729
    %v1412 = vunpack.c.l.b16 %v730
    %v1413 = vunpack.c.h.b16 %v730
    %v1414 = vunpack.c.l.b16 %v731
    %v1415 = vunpack.c.h.b16 %v731
    %v1416 = vunpack.c.l.b16 %v732
    %v1417 = vunpack.c.h.b16 %v732
    %v1418 = vunpack.c.l.b16 %v733
    %v1419 = vunpack.c.h.b16 %v733
    %v1420 = vunpack.c.l.b16 %v734
    %v1421 = vunpack.c.h.b16 %v734
    %v1422 = vunpack.c.l.b16 %v735
    %v1423 = vunpack.c.h.b16 %v735
    %v1424 = vunpack.c.l.b16 %v736
    %v1425 = vunpack.c.h.b16 %v736
    %v1426 = vunpack.c.l.b16 %v737
    %v1427 = vunpack.c.h.b16 %v737
    %v1428 = vunpack.c.l.b16 %v738
    %v1429 = vunpack.c.h.b16 %v738
    %v1430 = vunpack.c.l.b16 %v739
    %v1431 = vunpack.c.h.b16 %v739
    %v1432 = vunpack.c.l.b16 %v740
    %v1433 = vunpack.c.h.b16 %v740
    %v1434 = vunpack.c.l.b16 %v741
    %v1435 = vunpack.c.h.b16 %v741
    %v1436 = vunpack.c.l.b16 %v742
    %v1437 = vunpack.c.h.b16 %v742
    %v1438 = vunpack.c.l.b16 %v743
    %v1439 = vunpack.c.h.b16 %v743
    %v1440 = vunpack.c.l.b16 %v744
    %v1441 = vunpack.c.h.b16 %v744
    %v1442 = vunpack.c.l.b16 %v745
    %v1443 = vunpack.c.h.b16 %v745
    %v1444 = vunpack.c.l.b16 %v746
    %v1445 = vunpack.c.h.b16 %v746
    %v1446 = vunpack.c.l.b16 %v747
    %v1447 = vunpack.c.h.b16 %v747
    %v1448 = vunpack.c.l.b16 %v748
    %v1449 = vunpack.c.h.b16 %v748
    %v1450 = vunpack.c.l.b16 %v749
    %v1451 = vunpack.c.h.b16 %v749
    %v1452 = vunpack.c.l.b16 %v750
    %v1453 = vunpack.c.h.b16 %v750
    %v1454 = vunpack.c.l.b16 %v751
    %v1455 = vunpack.c.h.b16 %v751
    %v1456 = vunpack.c.l.b16 %v752
    %v1457 = vunpack.c.h.b16 %v752
    %v1458 = vunpack.c.l.b16 %v753
    %v1459 = vunpack.c.h.b16 %v753
    %v1460 = vunpack.c.l.b16 %v754
    %v1461 = vunpack.c.h.b16 %v754
    %v1462 = vunpack.c.l.b16 %v755
    %v1463 = vunpack.c.h.b16 %v755
    %v1464 = vunpack.c.l.b16 %v756
    %v1465 = vunpack.c.h.b16 %v756
    %v1466 = vunpack.c.l.b16 %v757
    %v1467 = vunpack.c.h.b16 %v757
    %v1468 = vunpack.c.l.b16 %v758
    %v1469 = vunpack.c.h.b16 %v758
    %v1470 = vunpack.c.l.b16 %v759
    %v1471 = vunpack.c.h.b16 %v759
    %v1472 = vunpack.c.l.b16 %v760
    %v1473 = vunpack.c.h.b16 %v760
    %v1474 = vunpack.c.l.b16 %v761
    %v1475 = vunpack.c.h.b16 %v761
    %v1476 = vunpack.c.l.b16 %v762
    %v1477 = vunpack.c.h.b16 %v762
    %v1478 = vunpack.c.l.b16 %v763
    %v1479 = vunpack.c.h.b16 %v763
    %v1480 = vunpack.c.l.b16 %v764
    %v1481 = vunpack.c.h.b16 %v764
    %v1482 = vunpack.c.l.b16 %v765
    %v1483 = vunpack.c.h.b16 %v765
    %v1484 = vunpack.c.l.b16 %v766
    %v1485 = vunpack.c.h.b16 %v766
    %v1486 = vunpack.c.l.b16 %v767
    %v1487 = vunpack.c.h.b16 %v767
    %v1488 = vunpack.c.l.b16 %v768
    %v1489 = vunpack.c.h.b16 %v768
    %v1490 = vunpack.c.l.b16 %v769
    %v1491 = vunpack.c.h.b16 %v769
    %v1492 = vunpack.c.l.b16 %v770
    %v1493 = vunpack.c.h.b16 %v770
    %v1494 = vunpack.c.l.b16 %v771
    %v1495 = vunpack.c.h.b16 %v771
    %v1496 = vunpack.c.l.b16 %v772
    %v1497 = vunpack.c.h.b16 %v772
    %v1498 = vunpack.c.l.b16 %v773
    %v1499 = vunpack.c.h.b16 %v773
    %v1500 = vunpack.c.l.b16 %v774
    %v1501 = vunpack.c.h.b16 %v774
    %v1502 = vunpack.c.l.b16 %v775
    %v1503 = vunpack.c.h.b16 %v775
    %v1504 = vunpack.c.l.b16 %v776
    %v1505 = vunpack.c.h.b16 %v776
    %v1506 = vunpack.c.l.b16 %v777
    %v1507 = vunpack.c.h.b16 %v777
    %v1508 = vunpack.c.l.b16 %v778
    %v1509 = vunpack.c.h.b16 %v778
    %v1510 = vunpack.c.l.b16 %v779
    %v1511 = vunpack.c.h.b16 %v779
    %v1512 = vunpack.c.l.b16 %v780
    %v1513 = vunpack.c.h.b16 %v780
    %v1514 = vunpack.c.l.b16 %v781
    %v1515 = vunpack.c.h.b16 %v781
    %v1516 = vunpack.c.l.b16 %v782
    %v1517 = vunpack.c.h.b16 %v782
    %v1518 = vunpack.c.l.b16 %v783
    %v1519 = vunpack.c.h.b16 %v783
    %v1520 = vunpack.c.l.b16 %v784
    %v1521 = vunpack.c.h.b16 %v784
    %v1522 = vunpack.c.l.b16 %v785
    %v1523 = vunpack.c.h.b16 %v785
    %v1524 = vunpack.c.l.b16 %v786
    %v1525 = vunpack.c.h.b16 %v786
    %v1526 = vunpack.c.l.b16 %v787
    %v1527 = vunpack.c.h.b16 %v787
    %v1528 = vunpack.c.l.b16 %v788
    %v1529 = vunpack.c.h.b16 %v788
    %v1530 = vunpack.c.l.b16 %v789
    %v1531 = vunpack.c.h.b16 %v789
    %v1532 = vunpack.c.l.b16 %v790
    %v1533 = vunpack.c.h.b16 %v790
    %v1534 = vunpack.c.l.b16 %v791
    %v1535 = vunpack.c.h.b16 %v791
    %v1536 = vunpack.c.l.b16 %v792
    %v1537 = vunpack.c.h.b16 %v792
    %v1538 = vunpack.c.l.b16 %v793
    %v1539 = vunpack.c.h.b16 %v793
    %v1540 = vunpack.c.l.b16 %v794
    %v1541 = vunpack.c.h.b16 %v794
    %v1542 = vunpack.c.l.b16 %v795
    %v1543 = vunpack.c.h.b16 %v795
    %v1544 = vunpack.c.l.b16 %v796
    %v1545 = vunpack.c.h.b16 %v796
    %v1546 = vunpack.c.l.b16 %v797
    %v1547 = vunpack.c.h.b16 %v797
    %v1548 = vunpack.c.l.b16 %v798
    %v1549 = vunpack.c.h.b16 %v798
    %v1550 = vunpack.c.l.b16 %v799
    %v1551 = vunpack.c.h.b16 %v799
    %v1552 = vunpack.c.l.b16 %v800
    %v1553 = vunpack.c.h.b16 %v800
    %v1554 = vunpack.c.l.b16 %v801
    %v1555 = vunpack.c.h.b16 %v801
    %v1556 = vunpack.c.l.b16 %v802
    %v1557 = vunpack.c.h.b16 %v802
    %v1558 = vunpack.c.l.b16 %v803
    %v1559 = vunpack.c.h.b16 %v803
    %v1560 = vunpack.c.l.b16 %v804
    %v1561 = vunpack.c.h.b16 %v804
    %v1562 = vunpack.c.l.b16 %v805
    %v1563 = vunpack.c.h.b16 %v805
    %v1564 = vunpack.c.l.b16 %v806
    %v1565 = vunpack.c.h.b16 %v806
    %v1566 = vunpack.c.l.b16 %v807
    %v1567 = vunpack.c.h.b16 %v807
    %v1568 = vunpack.c.l.b16 %v808
    %v1569 = vunpack.c.h.b16 %v808
    %v1570 = vunpack.c.l.b16 %v809
    %v1571 = vunpack.c.h.b16 %v809
    %v1572 = vunpack.c.l.b16 %v810
    %v1573 = vunpack.c.h.b16 %v810
    %v1574 = vunpack.c.l.b16 %v811
    %v1575 = vunpack.c.h.b16 %v811
    %v1576 = vunpack.c.l.b16 %v812
    %v1577 = vunpack.c.h.b16 %v812
    %v1578 = vunpack.c.l.b16 %v813
    %v1579 = vunpack.c.h.b16 %v813
    %v1580 = vunpack.c.l.b16 %v814
    %v1581 = vunpack.c.h.b16 %v814
    %v1582 = vunpack.c.l.b16 %v815
    %v1583 = vunpack.c.h.b16 %v815
    %v1584 = vunpack.c.l.b16 %v816
    %v1585 = vunpack.c.h.b16 %v816
    %v1586 = vunpack.c.l.b16 %v817
    %v1587 = vunpack.c.h.b16 %v817
    %v1588 = vunpack.c.l.b16 %v818
    %v1589 = vunpack.c.h.b16 %v818
    %v1590 = vunpack.c.l.b16 %v819
    %v1591 = vunpack.c.h.b16 %v819
    %v1592 = vunpack.c.l.b16 %v820
    %v1593 = vunpack.c.h.b16 %v820
    %v1594 = vunpack.c.l.b16 %v821
    %v1595 = vunpack.c.h.b16 %v821
    %v1596 = vunpack.c.l.b16 %v822
    %v1597 = vunpack.c.h.b16 %v822
    %v1598 = vunpack.c.l.b16 %v823
    %v1599 = vunpack.c.h.b16 %v823
    %v1600 = vunpack.c.l.b16 %v824
    %v1601 = vunpack.c.h.b16 %v824
    %v1602 = vunpack.c.l.b16 %v825
    %v1603 = vunpack.c.h.b16 %v825
    %v1604 = vunpack.c.l.b16 %v826
    %v1605 = vunpack.c.h.b16 %v826
    %v1606 = vunpack.c.l.b16 %v827
    %v1607 = vunpack.c.h.b16 %v827
    %v1608 = vpack.c.b16 %v1098, %v1096
    %v1609 = vpack.c.b16 %v1099, %v1097
    %v1610 = vpack.c.b16 %v1102, %v1100
    %v1611 = vpack.c.b16 %v1103, %v1101
    %v1612 = vpack.c.b16 %v1106, %v1104
    %v1613 = vpack.c.b16 %v1107, %v1105
    %v1614 = vpack.c.b16 %v1110, %v1108
    %v1615 = vpack.c.b16 %v1111, %v1109
    %v1616 = vpack.c.b16 %v1114, %v1112
    %v1617 = vpack.c.b16 %v1115, %v1113
    %v1618 = vpack.c.b16 %v1118, %v1116
    %v1619 = vpack.c.b16 %v1119, %v1117
    %v1620 = vpack.c.b16 %v1122, %v1120
    %v1621 = vpack.c.b16 %v1123, %v1121
    %v1622 = vpack.c.b16 %v1126, %v1124
    %v1623 = vpack.c.b16 %v1127, %v1125
    %v1624 = vpack.c.b16 %v1130, %v1128
    %v1625 = vpack.c.b16 %v1131, %v1129
    %v1626 = vpack.c.b16 %v1134, %v1132
    %v1627 = vpack.c.b16 %v1135, %v1133
    %v1628 = vpack.c.b16 %v1138, %v1136
    %v1629 = vpack.c.b16 %v1139, %v1137
    %v1630 = vpack.c.b16 %v1142, %v1140
    %v1631 = vpack.c.b16 %v1143, %v1141
    %v1632 = vpack.c.b16 %v1146, %v1144
    %v1633 = vpack.c.b16 %v1147, %v1145
    %v1634 = vpack.c.b16 %v1150, %v1148
    %v1635 = vpack.c.b16 %v1151, %v1149
    %v1636 = vpack.c.b16 %v1154, %v1152
    %v1637 = vpack.c.b16 %v1155, %v1153
    %v1638 = vpack.c.b16 %v1158, %v1156
    %v1639 = vpack.c.b16 %v1159, %v1157
    %v1640 = vpack.c.b16 %v1162, %v1160
    %v1641 = vpack.c.b16 %v1163, %v1161
    %v1642 = vpack.c.b16 %v1166, %v1164
    %v1643 = vpack.c.b16 %v1167, %v1165
    %v1644 = vpack.c.b16 %v1170, %v1168
    %v1645 = vpack.c.b16 %v1171, %v1169
    %v1646 = vpack.c.b16 %v1174, %v1172
    %v1647 = vpack.c.b16 %v1175, %v1173
    %v1648 = vpack.c.b16 %v1178, %v1176
    %v1649 = vpack.c.b16 %v1179, %v1177
    %v1650 = vpack.c.b16 %v1182, %v1180
    %v1651 = vpack.c.b16 %v1183, %v1181
    %v1652 = vpack.c.b16 %v1186, %v1184
    %v1653 = vpack.c.b16 %v1187, %v1185
    %v1654 = vpack.c.b16 %v1190, %v1188
    %v1655 = vpack.c.b16 %v1191, %v1189
    %v1656 = vpack.c.b16 %v1194, %v1192
    %v1657 = vpack.c.b16 %v1195, %v1193
    %v1658 = vpack.c.b16 %v1198, %v1196
    %v1659 = vpack.c.b16 %v1199, %v1197
    %v1660 = vpack.c.b16 %v1202, %v1200
    %v1661 = vpack.c.b16 %v1203, %v1201
    %v1662 = vpack.c.b16 %v1206, %v1204
    %v1663 = vpack.c.b16 %v1207, %v1205
    %v1664 = vpack.c.b16 %v1210, %v1208
    %v1665 = vpack.c.b16 %v1211, %v1209
    %v1666 = vpack.c.b16 %v1214, %v1212
    %v1667 = vpack.c.b16 %v1215, %v1213
    %v1668 = vpack.c.b16 %v1218, %v1216
    %v1669 = vpack.c.b16 %v1219, %v1217
    %v1670 = vpack.c.b16 %v1222, %v1220
    %v1671 = vpack.c.b16 %v1223, %v1221
    %v1672 = vpack.c.b16 %v1226, %v1224
    %v1673 = vpack.c.b16 %v1227, %v1225
    %v1674 = vpack.c.b16 %v1230, %v1228
    %v1675 = vpack.c.b16 %v1231, %v1229
    %v1676 = vpack.c.b16 %v1234, %v1232
    %v1677 = vpack.c.b16 %v1235, %v1233
    %v1678 = vpack.c.b16 %v1238, %v1236
    %v1679 = vpack.c.b16 %v1239, %v1237
    %v1680 = vpack.c.b16 %v1242, %v1240
    %v1681 = vpack.c.b16 %v1243, %v1241
    %v1682 = vpack.c.b16 %v1246, %v1244
    %v1683 = vpack.c.b16 %v1247, %v1245
    %v1684 = vpack.c.b16 %v1250, %v1248
    %v1685 = vpack.c.b16 %v1251, %v1249
    %v1686 = vpack.c.b16 %v1254, %v1252
    %v1687 = vpack.c.b16 %v1255, %v1253
    %v1688 = vpack.c.b16 %v1258, %v1256
    %v1689 = vpack.c.b16 %v1259, %v1257
    %v1690 = vpack.c.b16 %v1262, %v1260
    %v1691 = vpack.c.b16 %v1263, %v1261
    %v1692 = vpack.c.b16 %v1266, %v1264
    %v1693 = vpack.c.b16 %v1267, %v1265
    %v1694 = vpack.c.b16 %v1270, %v1268
    %v1695 = vpack.c.b16 %v1271, %v1269
    %v1696 = vpack.c.b16 %v1274, %v1272
    %v1697 = vpack.c.b16 %v1275, %v1273
    %v1698 = vpack.c.b16 %v1278, %v1276
    %v1699 = vpack.c.b16 %v1279, %v1277
    %v1700 = vpack.c.b16 %v1282, %v1280
    %v1701 = vpack.c.b16 %v1283, %v1281
    %v1702 = vpack.c.b16 %v1286, %v1284
    %v1703 = vpack.c.b16 %v1287, %v1285
    %v1704 = vpack.c.b16 %v1290, %v1288
    %v1705 = vpack.c.b16 %v1291, %v1289
    %v1706 = vpack.c.b16 %v1294, %v1292
    %v1707 = vpack.c.b16 %v1295, %v1293
    %v1708 = vpack.c.b16 %v1298, %v1296
    %v1709 = vpack.c.b16 %v1299, %v1297
    %v1710 = vpack.c.b16 %v1302, %v1300
    %v1711 = vpack.c.b16 %v1303, %v1301
    %v1712 = vpack.c.b16 %v1306, %v1304
    %v1713 = vpack.c.b16 %v1307, %v1305
    %v1714 = vpack.c.b16 %v1310, %v1308
    %v1715 = vpack.c.b16 %v1311, %v1309
    %v1716 = vpack.c.b16 %v1314, %v1312
    %v1717 = vpack.c.b16 %v1315, %v1313
    %v1718 = vpack.c.b16 %v1318, %v1316
    %v1719 = vpack.c.b16 %v1319, %v1317
    %v1720 = vpack.c.b16 %v1322, %v1320
    %v1721 = vpack.c.b16 %v1323, %v1321
    %v1722 = vpack.c.b16 %v1326, %v1324
    %v1723 = vpack.c.b16 %v1327, %v1325
    %v1724 = vpack.c.b16 %v1330, %v1328
    %v1725 = vpack.c.b16 %v1331, %v1329
    %v1726 = vpack.c.b16 %v1334, %v1332
    %v1727 = vpack.c.b16 %v1335, %v1333
    %v1728 = vpack.c.b16 %v1338, %v1336
    %v1729 = vpack.c.b16 %v1339, %v1337
    %v1730 = vpack.c.b16 %v1342, %v1340
    %v1731 = vpack.c.b16 %v1343, %v1341
    %v1732 = vpack.c.b16 %v1346, %v1344
    %v1733 = vpack.c.b16 %v1347, %v1345
    %v1734 = vpack.c.b16 %v1350, %v1348
    %v1735 = vpack.c.b16 %v1351, %v1349
    %v1736 = vpack.c.b16 %v1354, %v1352
    %v1737 = vpack.c.b16 %v1355, %v1353
    %v1738 = vpack.c.b16 %v1358, %v1356
    %v1739 = vpack.c.b16 %v1359, %v1357
    %v1740 = vpack.c.b16 %v1362, %v1360
    %v1741 = vpack.c.b16 %v1363, %v1361
    %v1742 = vpack.c.b16 %v1366, %v1364
    %v1743 = vpack.c.b16 %v1367, %v1365
    %v1744 = vpack.c.b16 %v1370, %v1368
    %v1745 = vpack.c.b16 %v1371, %v1369
    %v1746 = vpack.c.b16 %v1374, %v1372
    %v1747 = vpack.c.b16 %v1375, %v1373
    %v1748 = vpack.c.b16 %v1378, %v1376
    %v1749 = vpack.c.b16 %v1379, %v1377
    %v1750 = vpack.c.b16 %v1382, %v1380
    %v1751 = vpack.c.b16 %v1383, %v1381
    %v1752 = vpack.c.b16 %v1386, %v1384
    %v1753 = vpack.c.b16 %v1387, %v1385
    %v1754 = vpack.c.b16 %v1390, %v1388
    %v1755 = vpack.c.b16 %v1391, %v1389
    %v1756 = vpack.c.b16 %v1394, %v1392
    %v1757 = vpack.c.b16 %v1395, %v1393
    %v1758 = vpack.c.b16 %v1398, %v1396
    %v1759 = vpack.c.b16 %v1399, %v1397
    %v1760 = vpack.c.b16 %v1402, %v1400
    %v1761 = vpack.c.b16 %v1403, %v1401
    %v1762 = vpack.c.b16 %v1406, %v1404
    %v1763 = vpack.c.b16 %v1407, %v1405
    %v1764 = vpack.c.b16 %v1410, %v1408
    %v1765 = vpack.c.b16 %v1411, %v1409
    %v1766 = vpack.c.b16 %v1414, %v1412
    %v1767 = vpack.c.b16 %v1415, %v1413
    %v1768 = vpack.c.b16 %v1418, %v1416
    %v1769 = vpack.c.b16 %v1419, %v1417
    %v1770 = vpack.c.b16 %v1422, %v1420
    %v1771 = vpack.c.b16 %v1423, %v1421
    %v1772 = vpack.c.b16 %v1426, %v1424
    %v1773 = vpack.c.b16 %v1427, %v1425
    %v1774 = vpack.c.b16 %v1430, %v1428
    %v1775 = vpack.c.b16 %v1431, %v1429
    %v1776 = vpack.c.b16 %v1434, %v1432
    %v1777 = vpack.c.b16 %v1435, %v1433
    %v1778 = vpack.c.b16 %v1438, %v1436
    %v1779 = vpack.c.b16 %v1439, %v1437
    %v1780 = vpack.c.b16 %v1442, %v1440
    %v1781 = vpack.c.b16 %v1443, %v1441
    %v1782 = vpack.c.b16 %v1446, %v1444
    %v1783 = vpack.c.b16 %v1447, %v1445
    %v1784 = vpack.c.b16 %v1450, %v1448
    %v1785 = vpack.c.b16 %v1451, %v1449
    %v1786 = vpack.c.b16 %v1454, %v1452
    %v1787 = vpack.c.b16 %v1455, %v1453
    %v1788 = vpack.c.b16 %v1458, %v1456
    %v1789 = vpack.c.b16 %v1459, %v1457
    %v1790 = vpack.c.b16 %v1462, %v1460
    %v1791 = vpack.c.b16 %v1463, %v1461
    %v1792 = vpack.c.b16 %v1466, %v1464
    %v1793 = vpack.c.b16 %v1467, %v1465
    %v1794 = vpack.c.b16 %v1470, %v1468
    %v1795 = vpack.c.b16 %v1471, %v1469
    %v1796 = vpack.c.b16 %v1474, %v1472
    %v1797 = vpack.c.b16 %v1475, %v1473
    %v1798 = vpack.c.b16 %v1478, %v1476
    %v1799 = vpack.c.b16 %v1479, %v1477
    %v1800 = vpack.c.b16 %v1482, %v1480
    %v1801 = vpack.c.b16 %v1483, %v1481
    %v1802 = vpack.c.b16 %v1486, %v1484
    %v1803 = vpack.c.b16 %v1487, %v1485
    %v1804 = vpack.c.b16 %v1490, %v1488
    %v1805 = vpack.c.b16 %v1491, %v1489
    %v1806 = vpack.c.b16 %v1494, %v1492
    %v1807 = vpack.c.b16 %v1495, %v1493
    %v1808 = vpack.c.b16 %v1498, %v1496
    %v1809 = vpack.c.b16 %v1499, %v1497
    %v1810 = vpack.c.b16 %v1502, %v1500
    %v1811 = vpack.c.b16 %v1503, %v1501
    %v1812 = vpack.c.b16 %v1506, %v1504
    %v1813 = vpack.c.b16 %v1507, %v1505
    %v1814 = vpack.c.b16 %v1510, %v1508
    %v1815 = vpack.c.b16 %v1511, %v1509
    %v1816 = vpack.c.b16 %v1514, %v1512
    %v1817 = vpack.c.b16 %v1515, %v1513
    %v1818 = vpack.c.b16 %v1518, %v1516
    %v1819 = vpack.c.b16 %v1519, %v1517
    %v1820 = vpack.c.b16 %v1522, %v1520
    %v1821 = vpack.c.b16 %v1523, %v1521
    %v1822 = vpack.c.b16 %v1526, %v1524
    %v1823 = vpack.c.b16 %v1527, %v1525
    %v1824 = vpack.c.b16 %v1530, %v1528
    %v1825 = vpack.c.b16 %v1531, %v1529
    %v1826 = vpack.c.b16 %v1534, %v1532
    %v1827 = vpack.c.b16 %v1535, %v1533
    %v1828 = vpack.c.b16 %v1538, %v1536
    %v1829 = vpack.c.b16 %v1539, %v1537
    %v1830 = vpack.c.b16 %v1542, %v1540
    %v1831 = vpack.c.b16 %v1543, %v1541
    %v1832 = vpack.c.b16 %v1546, %v1544
    %v1833 = vpack.c.b16 %v1547, %v1545
    %v1834 = vpack.c.b16 %v1550, %v1548
    %v1835 = vpack.c.b16 %v1551, %v1549
    %v1836 = vpack.c.b16 %v1554, %v1552
    %v1837 = vpack.c.b16 %v1555, %v1553
    %v1838 = vpack.c.b16 %v1558, %v1556
    %v1839 = vpack.c.b16 %v1559, %v1557
    %v1840 = vpack.c.b16 %v1562, %v1560
    %v1841 = vpack.c.b16 %v1563, %v1561
    %v1842 = vpack.c.b16 %v1566, %v1564
    %v1843 = vpack.c.b16 %v1567, %v1565
    %v1844 = vpack.c.b16 %v1570, %v1568
    %v1845 = vpack.c.b16 %v1571, %v1569
    %v1846 = vpack.c.b16 %v1574, %v1572
    %v1847 = vpack.c.b16 %v1575, %v1573
    %v1848 = vpack.c.b16 %v1578, %v1576
    %v1849 = vpack.c.b16 %v1579, %v1577
    %v1850 = vpack.c.b16 %v1582, %v1580
    %v1851 = vpack.c.b16 %v1583, %v1581
    %v1852 = vpack.c.b16 %v1586, %v1584
    %v1853 = vpack.c.b16 %v1587, %v1585
    %v1854 = vpack.c.b16 %v1590, %v1588
    %v1855 = vpack.c.b16 %v1591, %v1589
    %v1856 = vpack.c.b16 %v1594, %v1592
    %v1857 = vpack.c.b16 %v1595, %v1593
    %v1858 = vpack.c.b16 %v1598, %v1596
    %v1859 = vpack.c.b16 %v1599, %v1597
    %v1860 = vpack.c.b16 %v1602, %v1600
    %v1861 = vpack.c.b16 %v1603, %v1601
    %v1862 = vpack.c.b16 %v1606, %v1604
    %v1863 = vpack.c.b16 %v1607, %v1605
    %2120 = vmatprep.subr.bf16.mxu0 %v1609
    %2121 = vmatpush1.bf16.msra.mxu0 %v1608
    %2122 = vmatprep.subr.bf16.mxu0 %v1611
    %2123 = vmatpush1.bf16.msra.mxu0 %v1610
    %2124 = vmatprep.subr.bf16.mxu0 %v1613
    %2125 = vmatpush1.bf16.msra.mxu0 %v1612
    %2126 = vmatprep.subr.bf16.mxu0 %v1615
    %2127 = vmatpush1.bf16.msra.mxu0 %v1614
    %2128 = vmatprep.subr.bf16.mxu0 %v1617
    %2129 = vmatpush1.bf16.msra.mxu0 %v1616
    %2130 = vmatprep.subr.bf16.mxu0 %v1619
    %2131 = vmatpush1.bf16.msra.mxu0 %v1618
    %2132 = vmatprep.subr.bf16.mxu0 %v1621
    %2133 = vmatpush1.bf16.msra.mxu0 %v1620
    %2134 = vmatprep.subr.bf16.mxu0 %v1623
    %2135 = vmatpush1.bf16.msra.mxu0 %v1622
    %2136 = vmatprep.subr.bf16.mxu0 %v1625
    %2137 = vmatpush1.bf16.msra.mxu0 %v1624
    %2138 = vmatprep.subr.bf16.mxu0 %v1627
    %2139 = vmatpush1.bf16.msra.mxu0 %v1626
    %2140 = vmatprep.subr.bf16.mxu0 %v1629
    %2141 = vmatpush1.bf16.msra.mxu0 %v1628
    %2142 = vmatprep.subr.bf16.mxu0 %v1631
    %2143 = vmatpush1.bf16.msra.mxu0 %v1630
    %2144 = vmatprep.subr.bf16.mxu0 %v1633
    %2145 = vmatpush1.bf16.msra.mxu0 %v1632
    %2146 = vmatprep.subr.bf16.mxu0 %v1635
    %2147 = vmatpush1.bf16.msra.mxu0 %v1634
    %2148 = vmatprep.subr.bf16.mxu0 %v1637
    %2149 = vmatpush1.bf16.msra.mxu0 %v1636
    %2150 = vmatprep.subr.bf16.mxu0 %v1639
    %2151 = vmatpush1.bf16.msra.mxu0 %v1638
    %2152 = vmatprep.mubr.bf16.mxu0 %v557
    %2153 = vmatmul.mubr.bf16.gmra.mrb[0].mxu0 %v556
    %v2154 = vpop.f32.mrb[0].mxu0
    %v2155 = vadd.f32 %v833, %v2154
    %v2156 = vpop.f32.mrb[0].mxu0
    %v2157 = vadd.f32 %v837, %v2156
    %v2158 = vpop.f32.mrb[0].mxu0
    %v2159 = vpop.f32.mrb[0].mxu0
    %2160 = vdwg.mxu0
    %2161 = vmatprep.subr.bf16.mxu0 %v1641
    %2162 = vmatpush1.bf16.msra.mxu0 %v1640
    %2163 = vmatprep.subr.bf16.mxu0 %v1643
    %2164 = vmatpush1.bf16.msra.mxu0 %v1642
    %2165 = vmatprep.subr.bf16.mxu0 %v1645
    %2166 = vmatpush1.bf16.msra.mxu0 %v1644
    %2167 = vmatprep.subr.bf16.mxu0 %v1647
    %2168 = vmatpush1.bf16.msra.mxu0 %v1646
    %2169 = vmatprep.subr.bf16.mxu0 %v1649
    %2170 = vmatpush1.bf16.msra.mxu0 %v1648
    %2171 = vmatprep.subr.bf16.mxu0 %v1651
    %2172 = vmatpush1.bf16.msra.mxu0 %v1650
    %2173 = vmatprep.subr.bf16.mxu0 %v1653
    %2174 = vmatpush1.bf16.msra.mxu0 %v1652
    %2175 = vmatprep.subr.bf16.mxu0 %v1655
    %2176 = vmatpush1.bf16.msra.mxu0 %v1654
    %2177 = vmatprep.subr.bf16.mxu0 %v1657
    %2178 = vmatpush1.bf16.msra.mxu0 %v1656
    %2179 = vmatprep.subr.bf16.mxu0 %v1659
    %2180 = vmatpush1.bf16.msra.mxu0 %v1658
    %2181 = vmatprep.subr.bf16.mxu0 %v1661
    %2182 = vmatpush1.bf16.msra.mxu0 %v1660
    %2183 = vmatprep.subr.bf16.mxu0 %v1663
    %2184 = vmatpush1.bf16.msra.mxu0 %v1662
    %2185 = vmatprep.subr.bf16.mxu0 %v1665
    %2186 = vmatpush1.bf16.msra.mxu0 %v1664
    %2187 = vmatprep.subr.bf16.mxu0 %v1667
    %2188 = vmatpush1.bf16.msra.mxu0 %v1666
    %2189 = vmatprep.subr.bf16.mxu0 %v1669
    %2190 = vmatpush1.bf16.msra.mxu0 %v1668
    %2191 = vmatprep.subr.bf16.mxu0 %v1671
    %2192 = vmatpush1.bf16.msra.mxu0 %v1670
    %2193 = vmatprep.mubr.bf16.mxu0 %v559
    %2194 = vmatmul.mubr.bf16.gmra.mrb[0].mxu0 %v558
    %v2195 = vpop.f32.mrb[0].mxu0
    %v2196 = vadd.f32 %v2155, %v2195
    %v2197 = vpop.f32.mrb[0].mxu0
    %v2198 = vadd.f32 %v2157, %v2197
    %v2199 = vpop.f32.mrb[0].mxu0
    %v2200 = vpop.f32.mrb[0].mxu0
    %2201 = vdwg.mxu0
    %2202 = vmatprep.subr.bf16.mxu0 %v1673
    %2203 = vmatpush1.bf16.msra.mxu0 %v1672
    %2204 = vmatprep.subr.bf16.mxu0 %v1675
    %2205 = vmatpush1.bf16.msra.mxu0 %v1674
    %2206 = vmatprep.subr.bf16.mxu0 %v1677
    %2207 = vmatpush1.bf16.msra.mxu0 %v1676
    %2208 = vmatprep.subr.bf16.mxu0 %v1679
    %2209 = vmatpush1.bf16.msra.mxu0 %v1678
    %2210 = vmatprep.subr.bf16.mxu0 %v1681
    %2211 = vmatpush1.bf16.msra.mxu0 %v1680
    %2212 = vmatprep.subr.bf16.mxu0 %v1683
    %2213 = vmatpush1.bf16.msra.mxu0 %v1682
    %2214 = vmatprep.subr.bf16.mxu0 %v1685
    %2215 = vmatpush1.bf16.msra.mxu0 %v1684
    %2216 = vmatprep.subr.bf16.mxu0 %v1687
    %2217 = vmatpush1.bf16.msra.mxu0 %v1686
    %2218 = vmatprep.subr.bf16.mxu0 %v1689
    %2219 = vmatpush1.bf16.msra.mxu0 %v1688
    %2220 = vmatprep.subr.bf16.mxu0 %v1691
    %2221 = vmatpush1.bf16.msra.mxu0 %v1690
    %2222 = vmatprep.subr.bf16.mxu0 %v1693
    %2223 = vmatpush1.bf16.msra.mxu0 %v1692
    %2224 = vmatprep.subr.bf16.mxu0 %v1695
    %2225 = vmatpush1.bf16.msra.mxu0 %v1694
    %2226 = vmatprep.subr.bf16.mxu0 %v1697
    %2227 = vmatpush1.bf16.msra.mxu0 %v1696
    %2228 = vmatprep.subr.bf16.mxu0 %v1699
    %2229 = vmatpush1.bf16.msra.mxu0 %v1698
    %2230 = vmatprep.subr.bf16.mxu0 %v1701
    %2231 = vmatpush1.bf16.msra.mxu0 %v1700
    %2232 = vmatprep.subr.bf16.mxu0 %v1703
    %2233 = vmatpush1.bf16.msra.mxu0 %v1702
    %2234 = vmatprep.mubr.bf16.mxu0 %v561
    %2235 = vmatmul.mubr.bf16.gmra.mrb[0].mxu0 %v560
    %v2236 = vpop.f32.mrb[0].mxu0
    %v2237 = vadd.f32 %v2196, %v2236
    %v2238 = vpop.f32.mrb[0].mxu0
    %v2239 = vadd.f32 %v2198, %v2238
    %v2240 = vpop.f32.mrb[0].mxu0
    %v2241 = vpop.f32.mrb[0].mxu0
    %2242 = vdwg.mxu0
    %2243 = vmatprep.subr.bf16.mxu0 %v1705
    %2244 = vmatpush1.bf16.msra.mxu0 %v1704
    %2245 = vmatprep.subr.bf16.mxu0 %v1707
    %2246 = vmatpush1.bf16.msra.mxu0 %v1706
    %2247 = vmatprep.subr.bf16.mxu0 %v1709
    %2248 = vmatpush1.bf16.msra.mxu0 %v1708
    %2249 = vmatprep.subr.bf16.mxu0 %v1711
    %2250 = vmatpush1.bf16.msra.mxu0 %v1710
    %2251 = vmatprep.subr.bf16.mxu0 %v1713
    %2252 = vmatpush1.bf16.msra.mxu0 %v1712
    %2253 = vmatprep.subr.bf16.mxu0 %v1715
    %2254 = vmatpush1.bf16.msra.mxu0 %v1714
    %2255 = vmatprep.subr.bf16.mxu0 %v1717
    %2256 = vmatpush1.bf16.msra.mxu0 %v1716
    %2257 = vmatprep.subr.bf16.mxu0 %v1719
    %2258 = vmatpush1.bf16.msra.mxu0 %v1718
    %2259 = vmatprep.subr.bf16.mxu0 %v1721
    %2260 = vmatpush1.bf16.msra.mxu0 %v1720
    %2261 = vmatprep.subr.bf16.mxu0 %v1723
    %2262 = vmatpush1.bf16.msra.mxu0 %v1722
    %2263 = vmatprep.subr.bf16.mxu0 %v1725
    %2264 = vmatpush1.bf16.msra.mxu0 %v1724
    %2265 = vmatprep.subr.bf16.mxu0 %v1727
    %2266 = vmatpush1.bf16.msra.mxu0 %v1726
    %2267 = vmatprep.subr.bf16.mxu0 %v1729
    %2268 = vmatpush1.bf16.msra.mxu0 %v1728
    %2269 = vmatprep.subr.bf16.mxu0 %v1731
    %2270 = vmatpush1.bf16.msra.mxu0 %v1730
    %2271 = vmatprep.subr.bf16.mxu0 %v1733
    %2272 = vmatpush1.bf16.msra.mxu0 %v1732
    %2273 = vmatprep.subr.bf16.mxu0 %v1735
    %2274 = vmatpush1.bf16.msra.mxu0 %v1734
    %2275 = vmatprep.mubr.bf16.mxu0 %v563
    %2276 = vmatmul.mubr.bf16.gmra.mrb[0].mxu0 %v562
    %v2277 = vpop.f32.mrb[0].mxu0
    %v2278 = vadd.f32 %v2237, %v2277
    %v2279 = vpop.f32.mrb[0].mxu0
    %v2280 = vadd.f32 %v2239, %v2279
    %v2281 = vpop.f32.mrb[0].mxu0
    %v2282 = vpop.f32.mrb[0].mxu0
    %2283 = vdwg.mxu0
    %2284 = vmatprep.subr.bf16.mxu0 %v1737
    %2285 = vmatpush1.bf16.msra.mxu0 %v1736
    %2286 = vmatprep.subr.bf16.mxu0 %v1739
    %2287 = vmatpush1.bf16.msra.mxu0 %v1738
    %2288 = vmatprep.subr.bf16.mxu0 %v1741
    %2289 = vmatpush1.bf16.msra.mxu0 %v1740
    %2290 = vmatprep.subr.bf16.mxu0 %v1743
    %2291 = vmatpush1.bf16.msra.mxu0 %v1742
    %2292 = vmatprep.subr.bf16.mxu0 %v1745
    %2293 = vmatpush1.bf16.msra.mxu0 %v1744
    %2294 = vmatprep.subr.bf16.mxu0 %v1747
    %2295 = vmatpush1.bf16.msra.mxu0 %v1746
    %2296 = vmatprep.subr.bf16.mxu0 %v1749
    %2297 = vmatpush1.bf16.msra.mxu0 %v1748
    %2298 = vmatprep.subr.bf16.mxu0 %v1751
    %2299 = vmatpush1.bf16.msra.mxu0 %v1750
    %2300 = vmatprep.subr.bf16.mxu0 %v1753
    %2301 = vmatpush1.bf16.msra.mxu0 %v1752
    %2302 = vmatprep.subr.bf16.mxu0 %v1755
    %2303 = vmatpush1.bf16.msra.mxu0 %v1754
    %2304 = vmatprep.subr.bf16.mxu0 %v1757
    %2305 = vmatpush1.bf16.msra.mxu0 %v1756
    %2306 = vmatprep.subr.bf16.mxu0 %v1759
    %2307 = vmatpush1.bf16.msra.mxu0 %v1758
    %2308 = vmatprep.subr.bf16.mxu0 %v1761
    %2309 = vmatpush1.bf16.msra.mxu0 %v1760
    %2310 = vmatprep.subr.bf16.mxu0 %v1763
    %2311 = vmatpush1.bf16.msra.mxu0 %v1762
    %2312 = vmatprep.subr.bf16.mxu0 %v1765
    %2313 = vmatpush1.bf16.msra.mxu0 %v1764
    %2314 = vmatprep.subr.bf16.mxu0 %v1767
    %2315 = vmatpush1.bf16.msra.mxu0 %v1766
    %2316 = vmatprep.mubr.bf16.mxu0 %v565
    %2317 = vmatmul.mubr.bf16.gmra.mrb[0].mxu0 %v564
    %v2318 = vpop.f32.mrb[0].mxu0
    %v2319 = vadd.f32 %v2278, %v2318
    %v2320 = vpop.f32.mrb[0].mxu0
    %v2321 = vadd.f32 %v2280, %v2320
    %v2322 = vpop.f32.mrb[0].mxu0
    %v2323 = vpop.f32.mrb[0].mxu0
    %2324 = vdwg.mxu0
    %2325 = vmatprep.subr.bf16.mxu0 %v1769
    %2326 = vmatpush1.bf16.msra.mxu0 %v1768
    %2327 = vmatprep.subr.bf16.mxu0 %v1771
    %2328 = vmatpush1.bf16.msra.mxu0 %v1770
    %2329 = vmatprep.subr.bf16.mxu0 %v1773
    %2330 = vmatpush1.bf16.msra.mxu0 %v1772
    %2331 = vmatprep.subr.bf16.mxu0 %v1775
    %2332 = vmatpush1.bf16.msra.mxu0 %v1774
    %2333 = vmatprep.subr.bf16.mxu0 %v1777
    %2334 = vmatpush1.bf16.msra.mxu0 %v1776
    %2335 = vmatprep.subr.bf16.mxu0 %v1779
    %2336 = vmatpush1.bf16.msra.mxu0 %v1778
    %2337 = vmatprep.subr.bf16.mxu0 %v1781
    %2338 = vmatpush1.bf16.msra.mxu0 %v1780
    %2339 = vmatprep.subr.bf16.mxu0 %v1783
    %2340 = vmatpush1.bf16.msra.mxu0 %v1782
    %2341 = vmatprep.subr.bf16.mxu0 %v1785
    %2342 = vmatpush1.bf16.msra.mxu0 %v1784
    %2343 = vmatprep.subr.bf16.mxu0 %v1787
    %2344 = vmatpush1.bf16.msra.mxu0 %v1786
    %2345 = vmatprep.subr.bf16.mxu0 %v1789
    %2346 = vmatpush1.bf16.msra.mxu0 %v1788
    %2347 = vmatprep.subr.bf16.mxu0 %v1791
    %2348 = vmatpush1.bf16.msra.mxu0 %v1790
    %2349 = vmatprep.subr.bf16.mxu0 %v1793
    %2350 = vmatpush1.bf16.msra.mxu0 %v1792
    %2351 = vmatprep.subr.bf16.mxu0 %v1795
    %2352 = vmatpush1.bf16.msra.mxu0 %v1794
    %2353 = vmatprep.subr.bf16.mxu0 %v1797
    %2354 = vmatpush1.bf16.msra.mxu0 %v1796
    %2355 = vmatprep.subr.bf16.mxu0 %v1799
    %2356 = vmatpush1.bf16.msra.mxu0 %v1798
    %2357 = vmatprep.mubr.bf16.mxu0 %v567
    %2358 = vmatmul.mubr.bf16.gmra.mrb[0].mxu0 %v566
    %v2359 = vpop.f32.mrb[0].mxu0
    %v2360 = vadd.f32 %v2319, %v2359
    %v2361 = vpop.f32.mrb[0].mxu0
    %v2362 = vadd.f32 %v2321, %v2361
    %v2363 = vpop.f32.mrb[0].mxu0
    %v2364 = vpop.f32.mrb[0].mxu0
    %2365 = vdwg.mxu0
    %2366 = vmatprep.subr.bf16.mxu0 %v1801
    %2367 = vmatpush1.bf16.msra.mxu0 %v1800
    %2368 = vmatprep.subr.bf16.mxu0 %v1803
    %2369 = vmatpush1.bf16.msra.mxu0 %v1802
    %2370 = vmatprep.subr.bf16.mxu0 %v1805
    %2371 = vmatpush1.bf16.msra.mxu0 %v1804
    %2372 = vmatprep.subr.bf16.mxu0 %v1807
    %2373 = vmatpush1.bf16.msra.mxu0 %v1806
    %2374 = vmatprep.subr.bf16.mxu0 %v1809
    %2375 = vmatpush1.bf16.msra.mxu0 %v1808
    %2376 = vmatprep.subr.bf16.mxu0 %v1811
    %2377 = vmatpush1.bf16.msra.mxu0 %v1810
    %2378 = vmatprep.subr.bf16.mxu0 %v1813
    %2379 = vmatpush1.bf16.msra.mxu0 %v1812
    %2380 = vmatprep.subr.bf16.mxu0 %v1815
    %2381 = vmatpush1.bf16.msra.mxu0 %v1814
    %2382 = vmatprep.subr.bf16.mxu0 %v1817
    %2383 = vmatpush1.bf16.msra.mxu0 %v1816
    %2384 = vmatprep.subr.bf16.mxu0 %v1819
    %2385 = vmatpush1.bf16.msra.mxu0 %v1818
    %2386 = vmatprep.subr.bf16.mxu0 %v1821
    %2387 = vmatpush1.bf16.msra.mxu0 %v1820
    %2388 = vmatprep.subr.bf16.mxu0 %v1823
    %2389 = vmatpush1.bf16.msra.mxu0 %v1822
    %2390 = vmatprep.subr.bf16.mxu0 %v1825
    %2391 = vmatpush1.bf16.msra.mxu0 %v1824
    %2392 = vmatprep.subr.bf16.mxu0 %v1827
    %2393 = vmatpush1.bf16.msra.mxu0 %v1826
    %2394 = vmatprep.subr.bf16.mxu0 %v1829
    %2395 = vmatpush1.bf16.msra.mxu0 %v1828
    %2396 = vmatprep.subr.bf16.mxu0 %v1831
    %2397 = vmatpush1.bf16.msra.mxu0 %v1830
    %2398 = vmatprep.mubr.bf16.mxu0 %v569
    %2399 = vmatmul.mubr.bf16.gmra.mrb[0].mxu0 %v568
    %v2400 = vpop.f32.mrb[0].mxu0
    %v2401 = vadd.f32 %v2360, %v2400
    %v2402 = vpop.f32.mrb[0].mxu0
    %v2403 = vadd.f32 %v2362, %v2402
    %v2404 = vpop.f32.mrb[0].mxu0
    %v2405 = vpop.f32.mrb[0].mxu0
    %2406 = vdwg.mxu0
    %2407 = vmatprep.subr.bf16.mxu0 %v1833
    %2408 = vmatpush1.bf16.msra.mxu0 %v1832
    %2409 = vmatprep.subr.bf16.mxu0 %v1835
    %2410 = vmatpush1.bf16.msra.mxu0 %v1834
    %2411 = vmatprep.subr.bf16.mxu0 %v1837
    %2412 = vmatpush1.bf16.msra.mxu0 %v1836
    %2413 = vmatprep.subr.bf16.mxu0 %v1839
    %2414 = vmatpush1.bf16.msra.mxu0 %v1838
    %2415 = vmatprep.subr.bf16.mxu0 %v1841
    %2416 = vmatpush1.bf16.msra.mxu0 %v1840
    %2417 = vmatprep.subr.bf16.mxu0 %v1843
    %2418 = vmatpush1.bf16.msra.mxu0 %v1842
    %2419 = vmatprep.subr.bf16.mxu0 %v1845
    %2420 = vmatpush1.bf16.msra.mxu0 %v1844
    %2421 = vmatprep.subr.bf16.mxu0 %v1847
    %2422 = vmatpush1.bf16.msra.mxu0 %v1846
    %2423 = vmatprep.subr.bf16.mxu0 %v1849
    %2424 = vmatpush1.bf16.msra.mxu0 %v1848
    %2425 = vmatprep.subr.bf16.mxu0 %v1851
    %2426 = vmatpush1.bf16.msra.mxu0 %v1850
    %2427 = vmatprep.subr.bf16.mxu0 %v1853
    %2428 = vmatpush1.bf16.msra.mxu0 %v1852
    %2429 = vmatprep.subr.bf16.mxu0 %v1855
    %2430 = vmatpush1.bf16.msra.mxu0 %v1854
    %2431 = vmatprep.subr.bf16.mxu0 %v1857
    %2432 = vmatpush1.bf16.msra.mxu0 %v1856
    %2433 = vmatprep.subr.bf16.mxu0 %v1859
    %2434 = vmatpush1.bf16.msra.mxu0 %v1858
    %2435 = vmatprep.subr.bf16.mxu0 %v1861
    %2436 = vmatpush1.bf16.msra.mxu0 %v1860
    %2437 = vmatprep.subr.bf16.mxu0 %v1863
    %2438 = vmatpush1.bf16.msra.mxu0 %v1862
    %2439 = vmatprep.mubr.bf16.mxu0 %v571
    %2440 = vmatmul.mubr.bf16.gmra.mrb[0].mxu0 %v570
    %v2441 = vpop.f32.mrb[0].mxu0
    %v2442 = vadd.f32 %v2401, %v2441
    %v2443 = vpop.f32.mrb[0].mxu0
    %v2444 = vadd.f32 %v2403, %v2443
    %v2445 = vpop.f32.mrb[0].mxu0
    %v2446 = vpop.f32.mrb[0].mxu0
    %2447 = vdwg.mxu0
    %2448 = vst [vmem:[#allocation8] sm:$0xff] %v2442
    %2449 = vst [vmem:[#allocation8 + $0x8] sm:$0xff] %v2444
    // Predicated region
    $region30: #{tpu_custom_call.1} parent=1 // pred_check
      _
    $region31: #{tpu_custom_call.1} parent=1 // pred_check_branch
      %2451 = sbr.rel (0) target = $region33
    $region32: #{tpu_custom_call.1} parent=1 // pred_region
      %s2453 = ssub.s32 256, 256
      %2454 = vsyncadd [#allocation4], %s2453
      %s2456 = sshll.u32 [#allocation8], 4
      %s2457 = int_to_ptr.vmem [resolvable:$true] %s2456
      %2459 = dma.vmem_to_hbm [thread:$0]  %s2457, 256, %s4, [#allocation4]
    $region33: #{tpu_custom_call.1} parent=1 // pred_fallthru
      _
    // Predicated region
    $region34: #{tpu_custom_call.1} parent=1 // pred_check
      _
    $region35: #{tpu_custom_call.1} parent=1 // pred_check_branch
      %2461 = sbr.rel (0) target = $region37
    $region36: #{tpu_custom_call.1} parent=1 // pred_region
      %2462 = dma.done [#allocation4], 256
    $region37: #{tpu_custom_call.1} parent=1 // pred_fallthru
      _
    %2463 = vsyncpa [#allocation3], 1
    %2464 = vsyncpa [#allocation6], 1
    %2465 = vsyncpa [#allocation4], 1

</llo_original>
